<compile_context>
chip_gen: v7x
topology: tpu7x:2x2x1
jax: 0.10.0
libtpu: 0.0.40
codegen_flags: <defaults>
</compile_context>

<pallas_src>
import functools

import jax
import jax.numpy as jnp
import numpy as np
from jax import lax
from jax.experimental import pallas as pl
from jax.experimental.pallas import tpu as pltpu


def _block2d_kernel(x_ref, w_ref, b_ref, o_ref, *, Nb, Ho, Wo, C, KH, KW,
                    slope):
    """im2col (in registers) + one MXU dot + bias + LeakyReLU, Nb images.

    x_ref: (Nb, Hp, Wp, C)        zero-padded NHWC input block (f32)
    w_ref: (KH*KW*C, Cpad)        BN-scale-folded im2col weight, lane-padded
    b_ref: (Nb*Ho*Wo, Cpad)       precomputed BN-shift bias (lane-padded)
    o_ref: (Nb*Ho*Wo, Cpad)       lane-dense output slab
    """
    M = Nb * Ho * Wo
    x = x_ref[...]                                       # (Nb, Hp, Wp, C)

    # Build the im2col LHS in registers; column order (kh, kw, c) matches w.
    cols = []
    for kh in range(KH):
        for kw in range(KW):
            patch = x[:, kh:kh + Ho, kw:kw + Wo, :]      # (Nb, Ho, Wo, C)
            cols.append(patch.reshape(M, C))
    lhs = jnp.concatenate(cols, axis=-1)                 # (M, KH*KW*C)

    # One MXU matmul (K = KH*KW*C), f32 accumulation.
    acc = jnp.dot(lhs, w_ref[...], preferred_element_type=jnp.float32)

    y = acc + b_ref[...]                                 # BN-shift contribution
    o_ref[...] = jnp.where(y >= 0, y, slope * y).astype(o_ref.dtype)


def _pick_batch_block(n):
    """Images per grid step: batch work but keep >=2 steps (v7x megacore)."""
    for nb in (8, 4, 2, 1):
        if n % nb == 0 and n // nb >= 2:
            return nb
    return n  # n == 1 (or tiny odd): single step


def _vmem_limit_bytes(nb, Hp, Wp, C, Ho, Wo, K, Cpad):
    """Scoped-VMEM request derived from the actual tile footprint."""
    f32 = 4
    m = nb * Ho * Wo
    in_blk = nb * Hp * Wp * C * f32
    w_blk = K * Cpad * f32
    b_blk = m * Cpad * f32
    o_blk = m * Cpad * f32
    # in-kernel temporaries: lane-padded im2col LHS, f32 accumulator/result,
    # and patch relayout copies.
    temps = m * (max(K, 128) + 2 * Cpad + (K // C) * max(C, 8)) * f32
    est = 2 * (in_blk + w_blk + b_blk + o_blk) + temps   # x2: double buffering
    return int(min(max(2 * est, 16 * 1024 * 1024), 48 * 1024 * 1024))


def block2d(x_nchw, w_oihw, gamma, beta, *, padding=1, eps=1e-5,
            negative_slope=0.1):
    """PyTorch-convention wrapper: NCHW input / OIHW weight -> NCHW output."""
    N, C, H, W = x_nchw.shape
    Cout, Cin, KH, KW = w_oihw.shape
    assert Cin == C

    Hp, Wp = H + 2 * padding, W + 2 * padding
    Ho, Wo = Hp - KH + 1, Wp - KW + 1
    LANE = 128
    Cpad = ((Cout + LANE - 1) // LANE) * LANE
    K = KH * KW * C

    xf = x_nchw.astype(jnp.float32)

    # --- BN stats (training mode, biased var) in ONE fused reduction ---------
    stats = jnp.mean(jnp.stack([xf, xf * xf]), axis=(1, 3, 4))       # (2, C)
    mean, ex2 = stats[0], stats[1]
    var = jnp.maximum(ex2 - mean * mean, 0.0)
    scale = gamma.astype(jnp.float32) * lax.rsqrt(var + eps)         # (C,)
    shift = beta.astype(jnp.float32) - mean * scale                  # (C,)

    # --- fold BN scale into the conv weight; lane-pad Cout -------------------
    wf = w_oihw.astype(jnp.float32)
    w_folded = wf * scale.reshape(1, C, 1, 1)                        # OIHW
    w_mat = jnp.transpose(w_folded, (2, 3, 1, 0)).reshape(K, Cout)
    w_mat = jnp.pad(w_mat, ((0, 0), (0, Cpad - Cout)))               # (K, Cpad)

    # --- BN shift -> position-dependent bias (handles the zero border) -------
    shift_img = jnp.broadcast_to(shift.reshape(1, C, 1, 1), (1, C, H, W))
    bias_nchw = lax.conv_general_dilated(
        shift_img, wf, window_strides=(1, 1),
        padding=((padding, padding), (padding, padding)),
        dimension_numbers=("NCHW", "OIHW", "NCHW"))                  # (1,Co,Ho,Wo)
    bias_hw = jnp.transpose(bias_nchw[0], (1, 2, 0)).reshape(Ho * Wo, Cout)
    bias_hw = jnp.pad(bias_hw, ((0, 0), (0, Cpad - Cout)))           # (Ho*Wo,Cpad)

    # --- layout prep: NHWC + spatial zero padding (fused, once, in XLA) ------
    x_pad = jnp.pad(jnp.transpose(xf, (0, 2, 3, 1)),
                    ((0, 0), (padding, padding), (padding, padding), (0, 0)))

    Nb = _pick_batch_block(N)
    steps = N // Nb
    M_blk = Nb * Ho * Wo
    bias_tiled = jnp.tile(bias_hw, (Nb, 1))                          # (M_blk,Cpad)

    kernel = functools.partial(
        _block2d_kernel, Nb=Nb, Ho=Ho, Wo=Wo, C=C, KH=KH, KW=KW,
        slope=negative_slope)

    out_flat = pl.pallas_call(
        kernel,
        out_shape=jax.ShapeDtypeStruct((steps * M_blk, Cpad), jnp.float32),
        grid=(steps,),
        in_specs=[
            pl.BlockSpec((Nb, Hp, Wp, C), lambda n: (n, 0, 0, 0)),
            pl.BlockSpec((K, Cpad), lambda n: (0, 0)),
            pl.BlockSpec((M_blk, Cpad), lambda n: (0, 0)),
        ],
        out_specs=pl.BlockSpec((M_blk, Cpad), lambda n: (n, 0)),
        compiler_params=pltpu.CompilerParams(
            dimension_semantics=("parallel",),
            vmem_limit_bytes=_vmem_limit_bytes(Nb, Hp, Wp, C, Ho, Wo, K, Cpad),
        ),
    )(x_pad, w_mat, bias_tiled)

    # Slice off lane padding, restore NCHW (one-time wrapper-side plumbing).
    out = out_flat[:, :Cout].reshape(N, Ho, Wo, Cout)
    return jnp.transpose(out, (0, 3, 1, 2)).astype(x_nchw.dtype)


def block2d_reference(x, w, gamma, beta, *, padding=1, eps=1e-5,
                      negative_slope=0.1):
    """Pure-JAX reference (NCHW), mirrors PyTorch training-mode forward."""
    mean = jnp.mean(x, axis=(0, 2, 3), keepdims=True)
    var = jnp.mean(jnp.square(x - mean), axis=(0, 2, 3), keepdims=True)
    xn = (x - mean) * lax.rsqrt(var + eps)
    xn = xn * gamma.reshape(1, -1, 1, 1) + beta.reshape(1, -1, 1, 1)
    y = lax.conv_general_dilated(
        xn, w, window_strides=(1, 1),
        padding=((padding, padding), (padding, padding)),
        dimension_numbers=("NCHW", "OIHW", "NCHW"),
    )
    return jnp.where(y > 0, y, negative_slope * y)


if __name__ == "__main__":
    # Small deterministic setup: batch=2, cin=4, cout=8, spatial=16x16.
    N, CIN, COUT, H, W = 2, 4, 8, 16, 16
    key = jax.random.PRNGKey(0)
    kx, kw = jax.random.split(key)

    x = jax.random.normal(kx, (N, CIN, H, W), dtype=jnp.float32)

    # Conv2d weight (OIHW), deterministic kaiming-uniform-like init, no bias.
    fan_in = CIN * 3 * 3
    bound = 1.0 / np.sqrt(fan_in)
    w = jax.random.uniform(kw, (COUT, CIN, 3, 3), dtype=jnp.float32,
                           minval=-bound, maxval=bound)

    # BatchNorm2d affine params at PyTorch init: gamma=1, beta=0.
    gamma = jnp.ones((CIN,), dtype=jnp.float32)
    beta = jnp.zeros((CIN,), dtype=jnp.float32)

    out = block2d(x, w, gamma, beta)
    out = jax.block_until_ready(out)

    ref = block2d_reference(x, w, gamma, beta)
    np.testing.assert_allclose(np.asarray(out), np.asarray(ref),
                               rtol=1e-4, atol=1e-4)

    print("KERNEL_OK")
</pallas_src>

<mosaic_0001>
module attributes {stable_mosaic.version = 11 : i64} {
  func.func @_block2d_kernel(%arg0: i32, %arg1: memref<1x18x18x4xf32, #tpu.memory_space<vmem>>, %arg2: memref<36x128xf32, #tpu.memory_space<vmem>>, %arg3: memref<256x128xf32, #tpu.memory_space<vmem>>, %arg4: memref<256x128xf32, #tpu.memory_space<vmem>>) attributes {dimension_semantics = [#tpu.dimension_semantics<parallel>], iteration_bounds = array<i64: 2>, scalar_prefetch = 0 : i64, scratch_operands = 0 : i64, tpu.core_type = #tpu.core_type<tc>, window_params = [{transform_indices = @transform_0, window_bounds = array<i64: 1, 18, 18, 4>}, {pipeline_mode = #tpu.pipeline_mode<synchronous>, transform_indices = @transform_1, window_bounds = array<i64: 36, 128>}, {pipeline_mode = #tpu.pipeline_mode<synchronous>, transform_indices = @transform_2, window_bounds = array<i64: 256, 128>}, {transform_indices = @transform_3, window_bounds = array<i64: 256, 128>}]} {
    %c0 = arith.constant 0 : index
    %c0_0 = arith.constant 0 : index
    %c0_1 = arith.constant 0 : index
    %c0_2 = arith.constant 0 : index
    %0 = vector.load %arg1[%c0, %c0_0, %c0_1, %c0_2] : memref<1x18x18x4xf32, #tpu.memory_space<vmem>>, vector<1x18x18x4xf32>
    %1 = vector.extract_strided_slice %0 {offsets = [0, 0, 0, 0], sizes = [1, 16, 16, 4], strides = [1, 1, 1, 1]} : vector<1x18x18x4xf32> to vector<1x16x16x4xf32>
    %2 = vector.shape_cast %1 : vector<1x16x16x4xf32> to vector<256x4xf32>
    %3 = vector.extract_strided_slice %0 {offsets = [0, 0, 1, 0], sizes = [1, 16, 16, 4], strides = [1, 1, 1, 1]} : vector<1x18x18x4xf32> to vector<1x16x16x4xf32>
    %4 = vector.shape_cast %3 : vector<1x16x16x4xf32> to vector<256x4xf32>
    %5 = vector.extract_strided_slice %0 {offsets = [0, 0, 2, 0], sizes = [1, 16, 16, 4], strides = [1, 1, 1, 1]} : vector<1x18x18x4xf32> to vector<1x16x16x4xf32>
    %6 = vector.shape_cast %5 : vector<1x16x16x4xf32> to vector<256x4xf32>
    %7 = vector.extract_strided_slice %0 {offsets = [0, 1, 0, 0], sizes = [1, 16, 16, 4], strides = [1, 1, 1, 1]} : vector<1x18x18x4xf32> to vector<1x16x16x4xf32>
    %8 = vector.shape_cast %7 : vector<1x16x16x4xf32> to vector<256x4xf32>
    %9 = vector.extract_strided_slice %0 {offsets = [0, 1, 1, 0], sizes = [1, 16, 16, 4], strides = [1, 1, 1, 1]} : vector<1x18x18x4xf32> to vector<1x16x16x4xf32>
    %10 = vector.shape_cast %9 : vector<1x16x16x4xf32> to vector<256x4xf32>
    %11 = vector.extract_strided_slice %0 {offsets = [0, 1, 2, 0], sizes = [1, 16, 16, 4], strides = [1, 1, 1, 1]} : vector<1x18x18x4xf32> to vector<1x16x16x4xf32>
    %12 = vector.shape_cast %11 : vector<1x16x16x4xf32> to vector<256x4xf32>
    %13 = vector.extract_strided_slice %0 {offsets = [0, 2, 0, 0], sizes = [1, 16, 16, 4], strides = [1, 1, 1, 1]} : vector<1x18x18x4xf32> to vector<1x16x16x4xf32>
    %14 = vector.shape_cast %13 : vector<1x16x16x4xf32> to vector<256x4xf32>
    %15 = vector.extract_strided_slice %0 {offsets = [0, 2, 1, 0], sizes = [1, 16, 16, 4], strides = [1, 1, 1, 1]} : vector<1x18x18x4xf32> to vector<1x16x16x4xf32>
    %16 = vector.shape_cast %15 : vector<1x16x16x4xf32> to vector<256x4xf32>
    %17 = vector.extract_strided_slice %0 {offsets = [0, 2, 2, 0], sizes = [1, 16, 16, 4], strides = [1, 1, 1, 1]} : vector<1x18x18x4xf32> to vector<1x16x16x4xf32>
    %18 = vector.shape_cast %17 : vector<1x16x16x4xf32> to vector<256x4xf32>
    %19 = tpu.concatenate %2, %4, %6, %8, %10, %12, %14, %16, %18 in 1 : vector<256x4xf32>, vector<256x4xf32>, vector<256x4xf32>, vector<256x4xf32>, vector<256x4xf32>, vector<256x4xf32>, vector<256x4xf32>, vector<256x4xf32>, vector<256x4xf32> -> vector<256x36xf32>
    %c0_3 = arith.constant 0 : index
    %c0_4 = arith.constant 0 : index
    %20 = vector.load %arg2[%c0_3, %c0_4] : memref<36x128xf32, #tpu.memory_space<vmem>>, vector<36x128xf32>
    %cst = arith.constant dense<0.000000e+00> : vector<256x128xf32>
    %21 = tpu.matmul %19, %20, %cst {dimension_numbers = #tpu.dot_dimension_numbers<[1], [0], [0], [1], [0, 0, 1, 1], [], []>} : vector<256x36xf32>, vector<36x128xf32>, vector<256x128xf32> -> vector<256x128xf32>
    %c0_5 = arith.constant 0 : index
    %c0_6 = arith.constant 0 : index
    %22 = vector.load %arg3[%c0_5, %c0_6] : memref<256x128xf32, #tpu.memory_space<vmem>>, vector<256x128xf32>
    %23 = arith.addf %21, %22 : vector<256x128xf32>
    %cst_7 = arith.constant 0.000000e+00 : f32
    %24 = vector.broadcast %cst_7 : f32 to vector<256x128xf32>
    %25 = arith.cmpf oge, %23, %24 : vector<256x128xf32>
    %cst_8 = arith.constant 1.000000e-01 : f32
    %26 = vector.broadcast %cst_8 : f32 to vector<256x128xf32>
    %27 = arith.mulf %26, %23 : vector<256x128xf32>
    %28 = arith.select %25, %23, %27 : vector<256x128xi1>, vector<256x128xf32>
    %c0_9 = arith.constant 0 : index
    %c0_10 = arith.constant 0 : index
    %29 = vector.load %arg4[%c0_9, %c0_10] : memref<256x128xf32, #tpu.memory_space<vmem>>, vector<256x128xf32>
    tpu.vector_store %arg4[%c0_9, %c0_10], %28 {strides = array<i32>} : memref<256x128xf32, #tpu.memory_space<vmem>>, vector<256x128xf32>,
    return
  }
  func.func @transform_0(%arg0: i32) -> (i32, i32, i32, i32) {
    %c0_i32 = arith.constant 0 : i32
    %c0_i32_0 = arith.constant 0 : i32
    %c0_i32_1 = arith.constant 0 : i32
    %c0_i32_2 = arith.constant 0 : i32
    return %arg0, %c0_i32, %c0_i32_0, %c0_i32_1 : i32, i32, i32, i32
  }
  func.func @transform_1(%arg0: i32) -> (i32, i32) {
    %c0_i32 = arith.constant 0 : i32
    %c0_i32_0 = arith.constant 0 : i32
    %c0_i32_1 = arith.constant 0 : i32
    return %c0_i32, %c0_i32_0 : i32, i32
  }
  func.func @transform_2(%arg0: i32) -> (i32, i32) {
    %c0_i32 = arith.constant 0 : i32
    %c0_i32_0 = arith.constant 0 : i32
    %c0_i32_1 = arith.constant 0 : i32
    return %c0_i32, %c0_i32_0 : i32, i32
  }
  func.func @transform_3(%arg0: i32) -> (i32, i32) {
    %c0_i32 = arith.constant 0 : i32
    %c0_i32_0 = arith.constant 0 : i32
    return %arg0, %c0_i32 : i32, i32
  }
}

</mosaic_0001>

<llo_original>
// kernel: tpu_custom_call.1
$region0: #{tpu_custom_call.1}
  #allocation0 [shape = 'u32[]', space=smem, size = 0x4, offset = 0x4, fixed_abs, tag = 'smem constant byte address 0x4 - core index']
  #allocation1 [shape = 'u32[144,128]{1,0:T(1,128)}', space=vmem, size = 0x12000, scoped, tag = 'internal scratch']
  %s0 = inlined_call_operand.vmem [shape: f32[2,18,18,4], index: 0, kind: input, shape index: {}]
  %s1 = inlined_call_operand.vmem [shape: f32[36,128], index: 1, kind: input, shape index: {}]
  %s2 = inlined_call_operand.vmem [shape: f32[256,128], index: 2, kind: input, shape index: {}]
  %s3 = inlined_call_operand.hbm [shape: f32[512,128], index: 3, kind: output, shape index: {}]
  %s4 = sld [smem:[#allocation0]]
  $region45: #{tpu_custom_call.1} parent=0
    _
  %s6 = ssub.s32 1, %s4
  %s7 = scalar_select 0, %s6, %s4
  $region1: #{tpu_custom_call.1} parent=0
    #allocation2 [shape = 'u8[262144]{0}', space=vmem, size = 0x40000, scoped, tag = 'output window, operand 0']
    #allocation3 [shape = 's32[2]{0}', space=sflag, size = 0x8, scoped, tag = 'scoped memory for tpu_custom_call.1']
    %8 = vsyncpa [#allocation3], 0
    %s9 = scalar_lea.sflag [#allocation3], 1
    %10 = vsyncpa %s9, 0
    loop: start=0, step=1, limit=4
    $region2: #{tpu_custom_call.1} parent=1 // loop_pre_header
      _
    $region3: #{tpu_custom_call.1} parent=1 // loop_header
      %s12 = sphi 0, %s16
      %p13 = scmp.ge.s32.totalorder %s12, 4
      %s22 = sphi 0, %s24
      %s25 = sphi 0, %s22
      %s26 = sphi 0, %s25
      %s42 = sphi 0, %s26
      %s46 = sphi 0, %s46
      %s48 = sphi 0, %s46
      %s49 = sphi 0, %s48
      %s63 = sphi 0, %s49
      %s67 = sphi 0, %s67
      %s69 = sphi 0, %s67
      %s70 = sphi 0, %s69
      %s84 = sphi 0, %s70
      %s90 = sphi 0, %s92
      %s93 = sphi 0, %s90
      %s94 = sphi 0, %s93
      %s110 = sphi 0, %s94
    $region4: #{tpu_custom_call.1} parent=1 // loop_header_branch
      %15 = sbr.rel (%p13) target = $region8
    $region5: #{tpu_custom_call.1} parent=1 // loop_body
      %s17 = ssub.s32 %s12, 1
      %s18 = ssub.s32 %s12, 2
      %s19 = sadd.s32 %s12, 1
      %s20 = ssub.s32 %s12, %s19
      %p21 = scmp.eq.s32.totalorder %s20, 0
      %s23 = sadd.s32 %s22, 1
      %s24 = scalar_select %p21, %s22, %s23
      %p27 = pneg %p21
      %p28 = scmp.eq.s32.totalorder %s12, 1
      %p29 = por %p27, %p28
      %p30 = scmp.ne.s32.totalorder %s22, %s25
      %p31 = scmp.eq.s32.totalorder %s12, 0
      %p32 = por %p30, %p31
      %p33 = scmp.ne.s32.totalorder %s22, %s25
      %p34 = scmp.eq.s32.totalorder %s17, 1
      %p35 = por %p33, %p34
      %p36 = scmp.ne.s32.totalorder %s25, %s26
      %p37 = scmp.eq.s32.totalorder %s17, 0
      %p38 = por %p36, %p37
      %p39 = scmp.ne.s32.totalorder %s25, %s26
      %p40 = scmp.eq.s32.totalorder %s18, 1
      %p41 = por %p39, %p40
      %p43 = scmp.ne.s32.totalorder %s26, %s42
      %p44 = scmp.eq.s32.totalorder %s18, 0
      %p45 = por %p43, %p44
      %s47 = sadd.s32 %s46, 1
      %p50 = scmp.eq.s32.totalorder %s12, 1
      %p51 = scmp.ne.s32.totalorder %s46, %s48
      %p52 = scmp.eq.s32.totalorder %s12, 0
      %p53 = por %p51, %p52
      %p54 = scmp.ne.s32.totalorder %s46, %s48
      %p55 = scmp.eq.s32.totalorder %s17, 1
      %p56 = por %p54, %p55
      %p57 = scmp.ne.s32.totalorder %s48, %s49
      %p58 = scmp.eq.s32.totalorder %s17, 0
      %p59 = por %p57, %p58
      %p60 = scmp.ne.s32.totalorder %s48, %s49
      %p61 = scmp.eq.s32.totalorder %s18, 1
      %p62 = por %p60, %p61
      %p64 = scmp.ne.s32.totalorder %s49, %s63
      %p65 = scmp.eq.s32.totalorder %s18, 0
      %p66 = por %p64, %p65
      %s68 = sadd.s32 %s67, 1
      %p71 = scmp.eq.s32.totalorder %s12, 1
      %p72 = scmp.ne.s32.totalorder %s67, %s69
      %p73 = scmp.eq.s32.totalorder %s12, 0
      %p74 = por %p72, %p73
      %p75 = scmp.ne.s32.totalorder %s67, %s69
      %p76 = scmp.eq.s32.totalorder %s17, 1
      %p77 = por %p75, %p76
      %p78 = scmp.ne.s32.totalorder %s69, %s70
      %p79 = scmp.eq.s32.totalorder %s17, 0
      %p80 = por %p78, %p79
      %p81 = scmp.ne.s32.totalorder %s69, %s70
      %p82 = scmp.eq.s32.totalorder %s18, 1
      %p83 = por %p81, %p82
      %p85 = scmp.ne.s32.totalorder %s70, %s84
      %p86 = scmp.eq.s32.totalorder %s18, 0
      %p87 = por %p85, %p86
      %s88 = ssub.s32 %s12, %s19
      %p89 = scmp.eq.s32.totalorder %s88, 0
      %s91 = sadd.s32 %s90, 1
      %s92 = scalar_select %p89, %s90, %s91
      %p95 = pneg %p89
      %p96 = scmp.eq.s32.totalorder %s12, 1
      %p97 = por %p95, %p96
      %p98 = scmp.ne.s32.totalorder %s90, %s93
      %p99 = scmp.eq.s32.totalorder %s12, 0
      %p100 = por %p98, %p99
      %p101 = scmp.ne.s32.totalorder %s90, %s93
      %p102 = scmp.eq.s32.totalorder %s17, 1
      %p103 = por %p101, %p102
      %p104 = scmp.ne.s32.totalorder %s93, %s94
      %p105 = scmp.eq.s32.totalorder %s17, 0
      %p106 = por %p104, %p105
      %p107 = scmp.ne.s32.totalorder %s93, %s94
      %p108 = scmp.eq.s32.totalorder %s18, 1
      %p109 = por %p107, %p108
      %p111 = scmp.ne.s32.totalorder %s94, %s110
      %p112 = scmp.eq.s32.totalorder %s18, 0
      %p113 = por %p111, %p112
      %p114 = scmp.le.s32.totalorder 1, %s12
      %p115 = scmp.lt.s32.totalorder %s12, 3
      %p116 = pnand %p114, %p115
      %p117 = pneg %p116
      // Predicated region
      $region9: #{tpu_custom_call.1} parent=5 // pred_check
        _
      $region10: #{tpu_custom_call.1} parent=5 // pred_check_branch
        %119 = sbr.rel (%p116) target = $region12
      $region11: #{tpu_custom_call.1} parent=5 // pred_region
        %s120 = ssub.s32 %s12, 1
        // Predicated region
        $region13: #{tpu_custom_call.1} parent=11 // pred_check
          %p121 = pneg %p59
        $region14: #{tpu_custom_call.1} parent=11 // pred_check_branch
          %123 = sbr.rel (%p121) target = $region16
        $region15: #{tpu_custom_call.1} parent=11 // pred_region
          _
        $region16: #{tpu_custom_call.1} parent=11 // pred_fallthru
          _
        // Predicated region
        $region17: #{tpu_custom_call.1} parent=11 // pred_check
          %p124 = pneg %p80
        $region18: #{tpu_custom_call.1} parent=11 // pred_check_branch
          %126 = sbr.rel (%p124) target = $region20
        $region19: #{tpu_custom_call.1} parent=11 // pred_region
          _
        $region20: #{tpu_custom_call.1} parent=11 // pred_fallthru
          _
      $region12: #{tpu_custom_call.1} parent=5 // pred_fallthru
        _
      %p127 = scmp.lt.s32.totalorder %s12, 2
      // Predicated region
      $region21: #{tpu_custom_call.1} parent=5 // pred_check
        %p128 = pneg %p127
      $region22: #{tpu_custom_call.1} parent=5 // pred_check_branch
        %130 = sbr.rel (%p128) target = $region24
      $region23: #{tpu_custom_call.1} parent=5 // pred_region
        // Predicated region
        $region25: #{tpu_custom_call.1} parent=23 // pred_check
          %p131 = pneg %p32
        $region26: #{tpu_custom_call.1} parent=23 // pred_check_branch
          %133 = sbr.rel (%p131) target = $region28
        $region27: #{tpu_custom_call.1} parent=23 // pred_region
          %p134 = scmp.lt.s32.totalorder %s12, 1
          %s135 = scalar_select %p134, %s12, 1
          %s136 = smul.addr %s135, 54
          %s137 = smul.addr %s136, 8
          %s138 = scalar_lea.vmem %s0, %s137
        $region28: #{tpu_custom_call.1} parent=23 // pred_fallthru
          _
      $region24: #{tpu_custom_call.1} parent=5 // pred_fallthru
        _
      %p139 = scmp.le.s32.totalorder 1, %s12
      %p140 = scmp.lt.s32.totalorder %s12, 3
      %p141 = pnand %p139, %p140
      %p142 = pneg %p141
      // Predicated region
      $region29: #{tpu_custom_call.1} parent=5 // pred_check
        _
      $region30: #{tpu_custom_call.1} parent=5 // pred_check_branch
        %144 = sbr.rel (%p141) target = $region32
      $region31: #{tpu_custom_call.1} parent=5 // pred_region
        %s145 = ssub.s32 %s12, 1
        %p146 = scmp.lt.s32.totalorder %s17, 1
        %s147 = scalar_select %p146, %s17, 1
        %s148 = smul.addr %s147, 54
        %s149 = smul.addr %s148, 8
        %s150 = scalar_lea.vmem %s0, %s149
        %p151 = pneg %p38
        %p152 = pneg %p35
        %p153 = pneg %p59
        %p154 = pneg %p56
        %p155 = pneg %p80
        %p156 = pneg %p77
        %p157 = pneg %p106
        %p158 = pneg %p103
        %s159 = sand.u32 %s93, 1
        %s160 = scalar_lea.sflag [#allocation3], %s159
        %s161 = sand.u32 %s93, 1
        %s162 = smul.addr %s161, 256
        %s163 = scalar_lea.vmem [#allocation2], %s162
        %p164 = scmp.lt.s32.totalorder %s17, 1
        %s165 = scalar_select %p164, %s17, 1
        %s166 = smul.addr %s165, 54
        %s167 = smul.addr %s166, 8
        %s168 = scalar_lea.vmem %s0, %s167
        %s169 = smul.u32 32, %s17
        %v170 = vld [vmem:[%s168] sm:$0xff]
        %v171 = vld [vmem:[%s168 + $0x8] sm:$0xff]
        %v172 = vld [vmem:[%s168 + $0x10] sm:$0x3]
        %v173 = vld [vmem:[%s168 + $0x18] sm:$0xff]
        %v174 = vld [vmem:[%s168 + $0x20] sm:$0xff]
        %v175 = vld [vmem:[%s168 + $0x28] sm:$0x3]
        %v176 = vld [vmem:[%s168 + $0x30] sm:$0xff]
        %v177 = vld [vmem:[%s168 + $0x38] sm:$0xff]
        %v178 = vld [vmem:[%s168 + $0x40] sm:$0x3]
        %v179 = vld [vmem:[%s168 + $0x48] sm:$0xff]
        %v180 = vld [vmem:[%s168 + $0x50] sm:$0xff]
        %v181 = vld [vmem:[%s168 + $0x58] sm:$0x3]
        %v182 = vld [vmem:[%s168 + $0x60] sm:$0xff]
        %v183 = vld [vmem:[%s168 + $0x68] sm:$0xff]
        %v184 = vld [vmem:[%s168 + $0x70] sm:$0x3]
        %v185 = vld [vmem:[%s168 + $0x78] sm:$0xff]
        %v186 = vld [vmem:[%s168 + $0x80] sm:$0xff]
        %v187 = vld [vmem:[%s168 + $0x88] sm:$0x3]
        %v188 = vld [vmem:[%s168 + $0x90] sm:$0xff]
        %v189 = vld [vmem:[%s168 + $0x98] sm:$0xff]
        %v190 = vld [vmem:[%s168 + $0xa0] sm:$0x3]
        %v191 = vld [vmem:[%s168 + $0xa8] sm:$0xff]
        %v192 = vld [vmem:[%s168 + $0xb0] sm:$0xff]
        %v193 = vld [vmem:[%s168 + $0xb8] sm:$0x3]
        %v194 = vld [vmem:[%s168 + $0xc0] sm:$0xff]
        %v195 = vld [vmem:[%s168 + $0xc8] sm:$0xff]
        %v196 = vld [vmem:[%s168 + $0xd0] sm:$0x3]
        %v197 = vld [vmem:[%s168 + $0xd8] sm:$0xff]
        %v198 = vld [vmem:[%s168 + $0xe0] sm:$0xff]
        %v199 = vld [vmem:[%s168 + $0xe8] sm:$0x3]
        %v200 = vld [vmem:[%s168 + $0xf0] sm:$0xff]
        %v201 = vld [vmem:[%s168 + $0xf8] sm:$0xff]
        %v202 = vld [vmem:[%s168 + $0x100] sm:$0x3]
        %v203 = vld [vmem:[%s168 + $0x108] sm:$0xff]
        %v204 = vld [vmem:[%s168 + $0x110] sm:$0xff]
        %v205 = vld [vmem:[%s168 + $0x118] sm:$0x3]
        %v206 = vld [vmem:[%s168 + $0x120] sm:$0xff]
        %v207 = vld [vmem:[%s168 + $0x128] sm:$0xff]
        %v208 = vld [vmem:[%s168 + $0x130] sm:$0x3]
        %v209 = vld [vmem:[%s168 + $0x138] sm:$0xff]
        %v210 = vld [vmem:[%s168 + $0x140] sm:$0xff]
        %v211 = vld [vmem:[%s168 + $0x148] sm:$0x3]
        %v212 = vld [vmem:[%s168 + $0x150] sm:$0xff]
        %v213 = vld [vmem:[%s168 + $0x158] sm:$0xff]
        %v214 = vld [vmem:[%s168 + $0x160] sm:$0x3]
        %v215 = vld [vmem:[%s168 + $0x168] sm:$0xff]
        %v216 = vld [vmem:[%s168 + $0x170] sm:$0xff]
        %v217 = vld [vmem:[%s168 + $0x178] sm:$0x3]
        %v218 = vld [vmem:[%s168 + $0x180] sm:$0xff]
        %v219 = vld [vmem:[%s168 + $0x188] sm:$0xff]
        %v220 = vld [vmem:[%s168 + $0x190] sm:$0x3]
        %v221 = vld [vmem:[%s168 + $0x198] sm:$0xff]
        %v222 = vld [vmem:[%s168 + $0x1a0] sm:$0xff]
        %v223 = vld [vmem:[%s168 + $0x1a8] sm:$0x3]
        %vm272 = vcmask 1046528
        %v273 = vrot.slane %v170, 1
        %v274 = vrot.slane %v171, 1
        %v275 = vsel %vm272, %v273, %v274
        %v276 = vrot.slane %v172, 1
        %v277 = vsel %vm272, %v274, %v276
        %v278 = vrot.slane %v173, 1
        %v279 = vrot.slane %v174, 1
        %v280 = vsel %vm272, %v278, %v279
        %v281 = vrot.slane %v175, 1
        %v282 = vsel %vm272, %v279, %v281
        %v283 = vrot.slane %v176, 1
        %v284 = vrot.slane %v177, 1
        %v285 = vsel %vm272, %v283, %v284
        %v286 = vrot.slane %v178, 1
        %v287 = vsel %vm272, %v284, %v286
        %v288 = vrot.slane %v179, 1
        %v289 = vrot.slane %v180, 1
        %v290 = vsel %vm272, %v288, %v289
        %v291 = vrot.slane %v181, 1
        %v292 = vsel %vm272, %v289, %v291
        %v293 = vrot.slane %v182, 1
        %v294 = vrot.slane %v183, 1
        %v295 = vsel %vm272, %v293, %v294
        %v296 = vrot.slane %v184, 1
        %v297 = vsel %vm272, %v294, %v296
        %v298 = vrot.slane %v185, 1
        %v299 = vrot.slane %v186, 1
        %v300 = vsel %vm272, %v298, %v299
        %v301 = vrot.slane %v187, 1
        %v302 = vsel %vm272, %v299, %v301
        %v303 = vrot.slane %v188, 1
        %v304 = vrot.slane %v189, 1
        %v305 = vsel %vm272, %v303, %v304
        %v306 = vrot.slane %v190, 1
        %v307 = vsel %vm272, %v304, %v306
        %v308 = vrot.slane %v191, 1
        %v309 = vrot.slane %v192, 1
        %v310 = vsel %vm272, %v308, %v309
        %v311 = vrot.slane %v193, 1
        %v312 = vsel %vm272, %v309, %v311
        %v313 = vrot.slane %v194, 1
        %v314 = vrot.slane %v195, 1
        %v315 = vsel %vm272, %v313, %v314
        %v316 = vrot.slane %v196, 1
        %v317 = vsel %vm272, %v314, %v316
        %v318 = vrot.slane %v197, 1
        %v319 = vrot.slane %v198, 1
        %v320 = vsel %vm272, %v318, %v319
        %v321 = vrot.slane %v199, 1
        %v322 = vsel %vm272, %v319, %v321
        %v323 = vrot.slane %v200, 1
        %v324 = vrot.slane %v201, 1
        %v325 = vsel %vm272, %v323, %v324
        %v326 = vrot.slane %v202, 1
        %v327 = vsel %vm272, %v324, %v326
        %v328 = vrot.slane %v203, 1
        %v329 = vrot.slane %v204, 1
        %v330 = vsel %vm272, %v328, %v329
        %v331 = vrot.slane %v205, 1
        %v332 = vsel %vm272, %v329, %v331
        %v333 = vrot.slane %v206, 1
        %v334 = vrot.slane %v207, 1
        %v335 = vsel %vm272, %v333, %v334
        %v336 = vrot.slane %v208, 1
        %v337 = vsel %vm272, %v334, %v336
        %v338 = vrot.slane %v209, 1
        %v339 = vrot.slane %v210, 1
        %v340 = vsel %vm272, %v338, %v339
        %v341 = vrot.slane %v211, 1
        %v342 = vsel %vm272, %v339, %v341
        %v343 = vrot.slane %v212, 1
        %v344 = vrot.slane %v213, 1
        %v345 = vsel %vm272, %v343, %v344
        %v346 = vrot.slane %v214, 1
        %v347 = vsel %vm272, %v344, %v346
        %v348 = vrot.slane %v215, 1
        %v349 = vrot.slane %v216, 1
        %v350 = vsel %vm272, %v348, %v349
        %v351 = vrot.slane %v217, 1
        %v352 = vsel %vm272, %v349, %v351
        %vm353 = vcmask 1045504
        %v354 = vrot.slane %v170, 2
        %v355 = vrot.slane %v171, 2
        %v356 = vsel %vm353, %v354, %v355
        %v357 = vrot.slane %v172, 2
        %v358 = vsel %vm353, %v355, %v357
        %v359 = vrot.slane %v173, 2
        %v360 = vrot.slane %v174, 2
        %v361 = vsel %vm353, %v359, %v360
        %v362 = vrot.slane %v175, 2
        %v363 = vsel %vm353, %v360, %v362
        %v364 = vrot.slane %v176, 2
        %v365 = vrot.slane %v177, 2
        %v366 = vsel %vm353, %v364, %v365
        %v367 = vrot.slane %v178, 2
        %v368 = vsel %vm353, %v365, %v367
        %v369 = vrot.slane %v179, 2
        %v370 = vrot.slane %v180, 2
        %v371 = vsel %vm353, %v369, %v370
        %v372 = vrot.slane %v181, 2
        %v373 = vsel %vm353, %v370, %v372
        %v374 = vrot.slane %v182, 2
        %v375 = vrot.slane %v183, 2
        %v376 = vsel %vm353, %v374, %v375
        %v377 = vrot.slane %v184, 2
        %v378 = vsel %vm353, %v375, %v377
        %v379 = vrot.slane %v185, 2
        %v380 = vrot.slane %v186, 2
        %v381 = vsel %vm353, %v379, %v380
        %v382 = vrot.slane %v187, 2
        %v383 = vsel %vm353, %v380, %v382
        %v384 = vrot.slane %v188, 2
        %v385 = vrot.slane %v189, 2
        %v386 = vsel %vm353, %v384, %v385
        %v387 = vrot.slane %v190, 2
        %v388 = vsel %vm353, %v385, %v387
        %v389 = vrot.slane %v191, 2
        %v390 = vrot.slane %v192, 2
        %v391 = vsel %vm353, %v389, %v390
        %v392 = vrot.slane %v193, 2
        %v393 = vsel %vm353, %v390, %v392
        %v394 = vrot.slane %v194, 2
        %v395 = vrot.slane %v195, 2
        %v396 = vsel %vm353, %v394, %v395
        %v397 = vrot.slane %v196, 2
        %v398 = vsel %vm353, %v395, %v397
        %v399 = vrot.slane %v197, 2
        %v400 = vrot.slane %v198, 2
        %v401 = vsel %vm353, %v399, %v400
        %v402 = vrot.slane %v199, 2
        %v403 = vsel %vm353, %v400, %v402
        %v404 = vrot.slane %v200, 2
        %v405 = vrot.slane %v201, 2
        %v406 = vsel %vm353, %v404, %v405
        %v407 = vrot.slane %v202, 2
        %v408 = vsel %vm353, %v405, %v407
        %v409 = vrot.slane %v203, 2
        %v410 = vrot.slane %v204, 2
        %v411 = vsel %vm353, %v409, %v410
        %v412 = vrot.slane %v205, 2
        %v413 = vsel %vm353, %v410, %v412
        %v414 = vrot.slane %v206, 2
        %v415 = vrot.slane %v207, 2
        %v416 = vsel %vm353, %v414, %v415
        %v417 = vrot.slane %v208, 2
        %v418 = vsel %vm353, %v415, %v417
        %v419 = vrot.slane %v209, 2
        %v420 = vrot.slane %v210, 2
        %v421 = vsel %vm353, %v419, %v420
        %v422 = vrot.slane %v211, 2
        %v423 = vsel %vm353, %v420, %v422
        %v424 = vrot.slane %v212, 2
        %v425 = vrot.slane %v213, 2
        %v426 = vsel %vm353, %v424, %v425
        %v427 = vrot.slane %v214, 2
        %v428 = vsel %vm353, %v425, %v427
        %v429 = vrot.slane %v215, 2
        %v430 = vrot.slane %v216, 2
        %v431 = vsel %vm353, %v429, %v430
        %v432 = vrot.slane %v217, 2
        %v433 = vsel %vm353, %v430, %v432
        %v437 = vrot.slane %v218, 1
        %v438 = vrot.slane %v219, 1
        %v439 = vsel %vm272, %v437, %v438
        %v440 = vrot.slane %v220, 1
        %v441 = vsel %vm272, %v438, %v440
        %v442 = vrot.slane %v218, 2
        %v443 = vrot.slane %v219, 2
        %v444 = vsel %vm353, %v442, %v443
        %v445 = vrot.slane %v220, 2
        %v446 = vsel %vm353, %v443, %v445
        %v450 = vrot.slane %v221, 1
        %v451 = vrot.slane %v222, 1
        %v452 = vsel %vm272, %v450, %v451
        %v453 = vrot.slane %v223, 1
        %v454 = vsel %vm272, %v451, %v453
        %v455 = vrot.slane %v221, 2
        %v456 = vrot.slane %v222, 2
        %v457 = vsel %vm353, %v455, %v456
        %v458 = vrot.slane %v223, 2
        %v459 = vsel %vm353, %v456, %v458
        %460 = vrot.lane.b32.xlu0 %v275, 4
        %v461 = vpop.permute.xlu0 %460
        %462 = vrot.lane.b32.xlu0 %v277, 4
        %v463 = vpop.permute.xlu0 %462
        %464 = vrot.lane.b32.xlu0 %v280, 4
        %v465 = vpop.permute.xlu0 %464
        %466 = vrot.lane.b32.xlu0 %v282, 4
        %v467 = vpop.permute.xlu0 %466
        %468 = vrot.lane.b32.xlu0 %v285, 4
        %v469 = vpop.permute.xlu0 %468
        %470 = vrot.lane.b32.xlu0 %v287, 4
        %v471 = vpop.permute.xlu0 %470
        %472 = vrot.lane.b32.xlu0 %v290, 4
        %v473 = vpop.permute.xlu0 %472
        %474 = vrot.lane.b32.xlu0 %v292, 4
        %v475 = vpop.permute.xlu0 %474
        %476 = vrot.lane.b32.xlu0 %v295, 4
        %v477 = vpop.permute.xlu0 %476
        %478 = vrot.lane.b32.xlu0 %v297, 4
        %v479 = vpop.permute.xlu0 %478
        %480 = vrot.lane.b32.xlu0 %v300, 4
        %v481 = vpop.permute.xlu0 %480
        %482 = vrot.lane.b32.xlu0 %v302, 4
        %v483 = vpop.permute.xlu0 %482
        %484 = vrot.lane.b32.xlu0 %v305, 4
        %v485 = vpop.permute.xlu0 %484
        %486 = vrot.lane.b32.xlu0 %v307, 4
        %v487 = vpop.permute.xlu0 %486
        %488 = vrot.lane.b32.xlu0 %v310, 4
        %v489 = vpop.permute.xlu0 %488
        %490 = vrot.lane.b32.xlu0 %v312, 4
        %v491 = vpop.permute.xlu0 %490
        %492 = vrot.lane.b32.xlu0 %v315, 4
        %v493 = vpop.permute.xlu0 %492
        %494 = vrot.lane.b32.xlu0 %v317, 4
        %v495 = vpop.permute.xlu0 %494
        %496 = vrot.lane.b32.xlu0 %v320, 4
        %v497 = vpop.permute.xlu0 %496
        %498 = vrot.lane.b32.xlu0 %v322, 4
        %v499 = vpop.permute.xlu0 %498
        %500 = vrot.lane.b32.xlu0 %v325, 4
        %v501 = vpop.permute.xlu0 %500
        %502 = vrot.lane.b32.xlu0 %v327, 4
        %v503 = vpop.permute.xlu0 %502
        %504 = vrot.lane.b32.xlu0 %v330, 4
        %v505 = vpop.permute.xlu0 %504
        %506 = vrot.lane.b32.xlu0 %v332, 4
        %v507 = vpop.permute.xlu0 %506
        %508 = vrot.lane.b32.xlu0 %v335, 4
        %v509 = vpop.permute.xlu0 %508
        %510 = vrot.lane.b32.xlu0 %v337, 4
        %v511 = vpop.permute.xlu0 %510
        %512 = vrot.lane.b32.xlu0 %v340, 4
        %v513 = vpop.permute.xlu0 %512
        %514 = vrot.lane.b32.xlu0 %v342, 4
        %v515 = vpop.permute.xlu0 %514
        %516 = vrot.lane.b32.xlu0 %v345, 4
        %v517 = vpop.permute.xlu0 %516
        %518 = vrot.lane.b32.xlu0 %v347, 4
        %v519 = vpop.permute.xlu0 %518
        %520 = vrot.lane.b32.xlu0 %v350, 4
        %v521 = vpop.permute.xlu0 %520
        %522 = vrot.lane.b32.xlu0 %v352, 4
        %v523 = vpop.permute.xlu0 %522
        %556 = vrot.lane.b32.xlu0 %v356, 8
        %v557 = vpop.permute.xlu0 %556
        %558 = vrot.lane.b32.xlu0 %v358, 8
        %v559 = vpop.permute.xlu0 %558
        %560 = vrot.lane.b32.xlu0 %v361, 8
        %v561 = vpop.permute.xlu0 %560
        %562 = vrot.lane.b32.xlu0 %v363, 8
        %v563 = vpop.permute.xlu0 %562
        %564 = vrot.lane.b32.xlu0 %v366, 8
        %v565 = vpop.permute.xlu0 %564
        %566 = vrot.lane.b32.xlu0 %v368, 8
        %v567 = vpop.permute.xlu0 %566
        %568 = vrot.lane.b32.xlu0 %v371, 8
        %v569 = vpop.permute.xlu0 %568
        %570 = vrot.lane.b32.xlu0 %v373, 8
        %v571 = vpop.permute.xlu0 %570
        %572 = vrot.lane.b32.xlu0 %v376, 8
        %v573 = vpop.permute.xlu0 %572
        %574 = vrot.lane.b32.xlu0 %v378, 8
        %v575 = vpop.permute.xlu0 %574
        %576 = vrot.lane.b32.xlu0 %v381, 8
        %v577 = vpop.permute.xlu0 %576
        %578 = vrot.lane.b32.xlu0 %v383, 8
        %v579 = vpop.permute.xlu0 %578
        %580 = vrot.lane.b32.xlu0 %v386, 8
        %v581 = vpop.permute.xlu0 %580
        %582 = vrot.lane.b32.xlu0 %v388, 8
        %v583 = vpop.permute.xlu0 %582
        %584 = vrot.lane.b32.xlu0 %v391, 8
        %v585 = vpop.permute.xlu0 %584
        %586 = vrot.lane.b32.xlu0 %v393, 8
        %v587 = vpop.permute.xlu0 %586
        %588 = vrot.lane.b32.xlu0 %v396, 8
        %v589 = vpop.permute.xlu0 %588
        %590 = vrot.lane.b32.xlu0 %v398, 8
        %v591 = vpop.permute.xlu0 %590
        %592 = vrot.lane.b32.xlu0 %v401, 8
        %v593 = vpop.permute.xlu0 %592
        %594 = vrot.lane.b32.xlu0 %v403, 8
        %v595 = vpop.permute.xlu0 %594
        %596 = vrot.lane.b32.xlu0 %v406, 8
        %v597 = vpop.permute.xlu0 %596
        %598 = vrot.lane.b32.xlu0 %v408, 8
        %v599 = vpop.permute.xlu0 %598
        %600 = vrot.lane.b32.xlu0 %v411, 8
        %v601 = vpop.permute.xlu0 %600
        %602 = vrot.lane.b32.xlu0 %v413, 8
        %v603 = vpop.permute.xlu0 %602
        %604 = vrot.lane.b32.xlu0 %v416, 8
        %v605 = vpop.permute.xlu0 %604
        %606 = vrot.lane.b32.xlu0 %v418, 8
        %v607 = vpop.permute.xlu0 %606
        %608 = vrot.lane.b32.xlu0 %v421, 8
        %v609 = vpop.permute.xlu0 %608
        %610 = vrot.lane.b32.xlu0 %v423, 8
        %v611 = vpop.permute.xlu0 %610
        %612 = vrot.lane.b32.xlu0 %v426, 8
        %v613 = vpop.permute.xlu0 %612
        %614 = vrot.lane.b32.xlu0 %v428, 8
        %v615 = vpop.permute.xlu0 %614
        %616 = vrot.lane.b32.xlu0 %v431, 8
        %v617 = vpop.permute.xlu0 %616
        %618 = vrot.lane.b32.xlu0 %v433, 8
        %v619 = vpop.permute.xlu0 %618
        %652 = vrot.lane.b32.xlu0 %v173, 12
        %v653 = vpop.permute.xlu0 %652
        %654 = vrot.lane.b32.xlu0 %v174, 12
        %v655 = vpop.permute.xlu0 %654
        %656 = vrot.lane.b32.xlu0 %v176, 12
        %v657 = vpop.permute.xlu0 %656
        %658 = vrot.lane.b32.xlu0 %v177, 12
        %v659 = vpop.permute.xlu0 %658
        %660 = vrot.lane.b32.xlu0 %v179, 12
        %v661 = vpop.permute.xlu0 %660
        %662 = vrot.lane.b32.xlu0 %v180, 12
        %v663 = vpop.permute.xlu0 %662
        %664 = vrot.lane.b32.xlu0 %v182, 12
        %v665 = vpop.permute.xlu0 %664
        %666 = vrot.lane.b32.xlu0 %v183, 12
        %v667 = vpop.permute.xlu0 %666
        %668 = vrot.lane.b32.xlu0 %v185, 12
        %v669 = vpop.permute.xlu0 %668
        %670 = vrot.lane.b32.xlu0 %v186, 12
        %v671 = vpop.permute.xlu0 %670
        %672 = vrot.lane.b32.xlu0 %v188, 12
        %v673 = vpop.permute.xlu0 %672
        %674 = vrot.lane.b32.xlu0 %v189, 12
        %v675 = vpop.permute.xlu0 %674
        %676 = vrot.lane.b32.xlu0 %v191, 12
        %v677 = vpop.permute.xlu0 %676
        %678 = vrot.lane.b32.xlu0 %v192, 12
        %v679 = vpop.permute.xlu0 %678
        %680 = vrot.lane.b32.xlu0 %v194, 12
        %v681 = vpop.permute.xlu0 %680
        %682 = vrot.lane.b32.xlu0 %v195, 12
        %v683 = vpop.permute.xlu0 %682
        %684 = vrot.lane.b32.xlu0 %v197, 12
        %v685 = vpop.permute.xlu0 %684
        %686 = vrot.lane.b32.xlu0 %v198, 12
        %v687 = vpop.permute.xlu0 %686
        %688 = vrot.lane.b32.xlu0 %v200, 12
        %v689 = vpop.permute.xlu0 %688
        %690 = vrot.lane.b32.xlu0 %v201, 12
        %v691 = vpop.permute.xlu0 %690
        %692 = vrot.lane.b32.xlu0 %v203, 12
        %v693 = vpop.permute.xlu0 %692
        %694 = vrot.lane.b32.xlu0 %v204, 12
        %v695 = vpop.permute.xlu0 %694
        %696 = vrot.lane.b32.xlu0 %v206, 12
        %v697 = vpop.permute.xlu0 %696
        %698 = vrot.lane.b32.xlu0 %v207, 12
        %v699 = vpop.permute.xlu0 %698
        %700 = vrot.lane.b32.xlu0 %v209, 12
        %v701 = vpop.permute.xlu0 %700
        %702 = vrot.lane.b32.xlu0 %v210, 12
        %v703 = vpop.permute.xlu0 %702
        %704 = vrot.lane.b32.xlu0 %v212, 12
        %v705 = vpop.permute.xlu0 %704
        %706 = vrot.lane.b32.xlu0 %v213, 12
        %v707 = vpop.permute.xlu0 %706
        %708 = vrot.lane.b32.xlu0 %v215, 12
        %v709 = vpop.permute.xlu0 %708
        %710 = vrot.lane.b32.xlu0 %v216, 12
        %v711 = vpop.permute.xlu0 %710
        %712 = vrot.lane.b32.xlu0 %v218, 12
        %v713 = vpop.permute.xlu0 %712
        %714 = vrot.lane.b32.xlu0 %v219, 12
        %v715 = vpop.permute.xlu0 %714
        %748 = vrot.lane.b32.xlu0 %v280, 16
        %v749 = vpop.permute.xlu0 %748
        %750 = vrot.lane.b32.xlu0 %v282, 16
        %v751 = vpop.permute.xlu0 %750
        %752 = vrot.lane.b32.xlu0 %v285, 16
        %v753 = vpop.permute.xlu0 %752
        %754 = vrot.lane.b32.xlu0 %v287, 16
        %v755 = vpop.permute.xlu0 %754
        %756 = vrot.lane.b32.xlu0 %v290, 16
        %v757 = vpop.permute.xlu0 %756
        %758 = vrot.lane.b32.xlu0 %v292, 16
        %v759 = vpop.permute.xlu0 %758
        %760 = vrot.lane.b32.xlu0 %v295, 16
        %v761 = vpop.permute.xlu0 %760
        %762 = vrot.lane.b32.xlu0 %v297, 16
        %v763 = vpop.permute.xlu0 %762
        %764 = vrot.lane.b32.xlu0 %v300, 16
        %v765 = vpop.permute.xlu0 %764
        %766 = vrot.lane.b32.xlu0 %v302, 16
        %v767 = vpop.permute.xlu0 %766
        %768 = vrot.lane.b32.xlu0 %v305, 16
        %v769 = vpop.permute.xlu0 %768
        %770 = vrot.lane.b32.xlu0 %v307, 16
        %v771 = vpop.permute.xlu0 %770
        %772 = vrot.lane.b32.xlu0 %v310, 16
        %v773 = vpop.permute.xlu0 %772
        %774 = vrot.lane.b32.xlu0 %v312, 16
        %v775 = vpop.permute.xlu0 %774
        %776 = vrot.lane.b32.xlu0 %v315, 16
        %v777 = vpop.permute.xlu0 %776
        %778 = vrot.lane.b32.xlu0 %v317, 16
        %v779 = vpop.permute.xlu0 %778
        %780 = vrot.lane.b32.xlu0 %v320, 16
        %v781 = vpop.permute.xlu0 %780
        %782 = vrot.lane.b32.xlu0 %v322, 16
        %v783 = vpop.permute.xlu0 %782
        %784 = vrot.lane.b32.xlu0 %v325, 16
        %v785 = vpop.permute.xlu0 %784
        %786 = vrot.lane.b32.xlu0 %v327, 16
        %v787 = vpop.permute.xlu0 %786
        %788 = vrot.lane.b32.xlu0 %v330, 16
        %v789 = vpop.permute.xlu0 %788
        %790 = vrot.lane.b32.xlu0 %v332, 16
        %v791 = vpop.permute.xlu0 %790
        %792 = vrot.lane.b32.xlu0 %v335, 16
        %v793 = vpop.permute.xlu0 %792
        %794 = vrot.lane.b32.xlu0 %v337, 16
        %v795 = vpop.permute.xlu0 %794
        %796 = vrot.lane.b32.xlu0 %v340, 16
        %v797 = vpop.permute.xlu0 %796
        %798 = vrot.lane.b32.xlu0 %v342, 16
        %v799 = vpop.permute.xlu0 %798
        %800 = vrot.lane.b32.xlu0 %v345, 16
        %v801 = vpop.permute.xlu0 %800
        %802 = vrot.lane.b32.xlu0 %v347, 16
        %v803 = vpop.permute.xlu0 %802
        %804 = vrot.lane.b32.xlu0 %v350, 16
        %v805 = vpop.permute.xlu0 %804
        %806 = vrot.lane.b32.xlu0 %v352, 16
        %v807 = vpop.permute.xlu0 %806
        %808 = vrot.lane.b32.xlu0 %v439, 16
        %v809 = vpop.permute.xlu0 %808
        %810 = vrot.lane.b32.xlu0 %v441, 16
        %v811 = vpop.permute.xlu0 %810
        %844 = vrot.lane.b32.xlu0 %v361, 20
        %v845 = vpop.permute.xlu0 %844
        %846 = vrot.lane.b32.xlu0 %v363, 20
        %v847 = vpop.permute.xlu0 %846
        %848 = vrot.lane.b32.xlu0 %v366, 20
        %v849 = vpop.permute.xlu0 %848
        %850 = vrot.lane.b32.xlu0 %v368, 20
        %v851 = vpop.permute.xlu0 %850
        %852 = vrot.lane.b32.xlu0 %v371, 20
        %v853 = vpop.permute.xlu0 %852
        %854 = vrot.lane.b32.xlu0 %v373, 20
        %v855 = vpop.permute.xlu0 %854
        %856 = vrot.lane.b32.xlu0 %v376, 20
        %v857 = vpop.permute.xlu0 %856
        %858 = vrot.lane.b32.xlu0 %v378, 20
        %v859 = vpop.permute.xlu0 %858
        %860 = vrot.lane.b32.xlu0 %v381, 20
        %v861 = vpop.permute.xlu0 %860
        %862 = vrot.lane.b32.xlu0 %v383, 20
        %v863 = vpop.permute.xlu0 %862
        %864 = vrot.lane.b32.xlu0 %v386, 20
        %v865 = vpop.permute.xlu0 %864
        %866 = vrot.lane.b32.xlu0 %v388, 20
        %v867 = vpop.permute.xlu0 %866
        %868 = vrot.lane.b32.xlu0 %v391, 20
        %v869 = vpop.permute.xlu0 %868
        %870 = vrot.lane.b32.xlu0 %v393, 20
        %v871 = vpop.permute.xlu0 %870
        %872 = vrot.lane.b32.xlu0 %v396, 20
        %v873 = vpop.permute.xlu0 %872
        %874 = vrot.lane.b32.xlu0 %v398, 20
        %v875 = vpop.permute.xlu0 %874
        %876 = vrot.lane.b32.xlu0 %v401, 20
        %v877 = vpop.permute.xlu0 %876
        %878 = vrot.lane.b32.xlu0 %v403, 20
        %v879 = vpop.permute.xlu0 %878
        %880 = vrot.lane.b32.xlu0 %v406, 20
        %v881 = vpop.permute.xlu0 %880
        %882 = vrot.lane.b32.xlu0 %v408, 20
        %v883 = vpop.permute.xlu0 %882
        %884 = vrot.lane.b32.xlu0 %v411, 20
        %v885 = vpop.permute.xlu0 %884
        %886 = vrot.lane.b32.xlu0 %v413, 20
        %v887 = vpop.permute.xlu0 %886
        %888 = vrot.lane.b32.xlu0 %v416, 20
        %v889 = vpop.permute.xlu0 %888
        %890 = vrot.lane.b32.xlu0 %v418, 20
        %v891 = vpop.permute.xlu0 %890
        %892 = vrot.lane.b32.xlu0 %v421, 20
        %v893 = vpop.permute.xlu0 %892
        %894 = vrot.lane.b32.xlu0 %v423, 20
        %v895 = vpop.permute.xlu0 %894
        %896 = vrot.lane.b32.xlu0 %v426, 20
        %v897 = vpop.permute.xlu0 %896
        %898 = vrot.lane.b32.xlu0 %v428, 20
        %v899 = vpop.permute.xlu0 %898
        %900 = vrot.lane.b32.xlu0 %v431, 20
        %v901 = vpop.permute.xlu0 %900
        %902 = vrot.lane.b32.xlu0 %v433, 20
        %v903 = vpop.permute.xlu0 %902
        %904 = vrot.lane.b32.xlu0 %v444, 20
        %v905 = vpop.permute.xlu0 %904
        %906 = vrot.lane.b32.xlu0 %v446, 20
        %v907 = vpop.permute.xlu0 %906
        %940 = vrot.lane.b32.xlu0 %v176, 24
        %v941 = vpop.permute.xlu0 %940
        %942 = vrot.lane.b32.xlu0 %v177, 24
        %v943 = vpop.permute.xlu0 %942
        %944 = vrot.lane.b32.xlu0 %v179, 24
        %v945 = vpop.permute.xlu0 %944
        %946 = vrot.lane.b32.xlu0 %v180, 24
        %v947 = vpop.permute.xlu0 %946
        %948 = vrot.lane.b32.xlu0 %v182, 24
        %v949 = vpop.permute.xlu0 %948
        %950 = vrot.lane.b32.xlu0 %v183, 24
        %v951 = vpop.permute.xlu0 %950
        %952 = vrot.lane.b32.xlu0 %v185, 24
        %v953 = vpop.permute.xlu0 %952
        %954 = vrot.lane.b32.xlu0 %v186, 24
        %v955 = vpop.permute.xlu0 %954
        %956 = vrot.lane.b32.xlu0 %v188, 24
        %v957 = vpop.permute.xlu0 %956
        %958 = vrot.lane.b32.xlu0 %v189, 24
        %v959 = vpop.permute.xlu0 %958
        %960 = vrot.lane.b32.xlu0 %v191, 24
        %v961 = vpop.permute.xlu0 %960
        %962 = vrot.lane.b32.xlu0 %v192, 24
        %v963 = vpop.permute.xlu0 %962
        %964 = vrot.lane.b32.xlu0 %v194, 24
        %v965 = vpop.permute.xlu0 %964
        %966 = vrot.lane.b32.xlu0 %v195, 24
        %v967 = vpop.permute.xlu0 %966
        %968 = vrot.lane.b32.xlu0 %v197, 24
        %v969 = vpop.permute.xlu0 %968
        %970 = vrot.lane.b32.xlu0 %v198, 24
        %v971 = vpop.permute.xlu0 %970
        %972 = vrot.lane.b32.xlu0 %v200, 24
        %v973 = vpop.permute.xlu0 %972
        %974 = vrot.lane.b32.xlu0 %v201, 24
        %v975 = vpop.permute.xlu0 %974
        %976 = vrot.lane.b32.xlu0 %v203, 24
        %v977 = vpop.permute.xlu0 %976
        %978 = vrot.lane.b32.xlu0 %v204, 24
        %v979 = vpop.permute.xlu0 %978
        %980 = vrot.lane.b32.xlu0 %v206, 24
        %v981 = vpop.permute.xlu0 %980
        %982 = vrot.lane.b32.xlu0 %v207, 24
        %v983 = vpop.permute.xlu0 %982
        %984 = vrot.lane.b32.xlu0 %v209, 24
        %v985 = vpop.permute.xlu0 %984
        %986 = vrot.lane.b32.xlu0 %v210, 24
        %v987 = vpop.permute.xlu0 %986
        %988 = vrot.lane.b32.xlu0 %v212, 24
        %v989 = vpop.permute.xlu0 %988
        %990 = vrot.lane.b32.xlu0 %v213, 24
        %v991 = vpop.permute.xlu0 %990
        %992 = vrot.lane.b32.xlu0 %v215, 24
        %v993 = vpop.permute.xlu0 %992
        %994 = vrot.lane.b32.xlu0 %v216, 24
        %v995 = vpop.permute.xlu0 %994
        %996 = vrot.lane.b32.xlu0 %v218, 24
        %v997 = vpop.permute.xlu0 %996
        %998 = vrot.lane.b32.xlu0 %v219, 24
        %v999 = vpop.permute.xlu0 %998
        %1000 = vrot.lane.b32.xlu0 %v221, 24
        %v1001 = vpop.permute.xlu0 %1000
        %1002 = vrot.lane.b32.xlu0 %v222, 24
        %v1003 = vpop.permute.xlu0 %1002
        %1036 = vrot.lane.b32.xlu0 %v285, 28
        %v1037 = vpop.permute.xlu0 %1036
        %1038 = vrot.lane.b32.xlu0 %v287, 28
        %v1039 = vpop.permute.xlu0 %1038
        %1040 = vrot.lane.b32.xlu0 %v290, 28
        %v1041 = vpop.permute.xlu0 %1040
        %1042 = vrot.lane.b32.xlu0 %v292, 28
        %v1043 = vpop.permute.xlu0 %1042
        %1044 = vrot.lane.b32.xlu0 %v295, 28
        %v1045 = vpop.permute.xlu0 %1044
        %1046 = vrot.lane.b32.xlu0 %v297, 28
        %v1047 = vpop.permute.xlu0 %1046
        %1048 = vrot.lane.b32.xlu0 %v300, 28
        %v1049 = vpop.permute.xlu0 %1048
        %1050 = vrot.lane.b32.xlu0 %v302, 28
        %v1051 = vpop.permute.xlu0 %1050
        %1052 = vrot.lane.b32.xlu0 %v305, 28
        %v1053 = vpop.permute.xlu0 %1052
        %1054 = vrot.lane.b32.xlu0 %v307, 28
        %v1055 = vpop.permute.xlu0 %1054
        %1056 = vrot.lane.b32.xlu0 %v310, 28
        %v1057 = vpop.permute.xlu0 %1056
        %1058 = vrot.lane.b32.xlu0 %v312, 28
        %v1059 = vpop.permute.xlu0 %1058
        %1060 = vrot.lane.b32.xlu0 %v315, 28
        %v1061 = vpop.permute.xlu0 %1060
        %1062 = vrot.lane.b32.xlu0 %v317, 28
        %v1063 = vpop.permute.xlu0 %1062
        %1064 = vrot.lane.b32.xlu0 %v320, 28
        %v1065 = vpop.permute.xlu0 %1064
        %1066 = vrot.lane.b32.xlu0 %v322, 28
        %v1067 = vpop.permute.xlu0 %1066
        %1068 = vrot.lane.b32.xlu0 %v325, 28
        %v1069 = vpop.permute.xlu0 %1068
        %1070 = vrot.lane.b32.xlu0 %v327, 28
        %v1071 = vpop.permute.xlu0 %1070
        %1072 = vrot.lane.b32.xlu0 %v330, 28
        %v1073 = vpop.permute.xlu0 %1072
        %1074 = vrot.lane.b32.xlu0 %v332, 28
        %v1075 = vpop.permute.xlu0 %1074
        %1076 = vrot.lane.b32.xlu0 %v335, 28
        %v1077 = vpop.permute.xlu0 %1076
        %1078 = vrot.lane.b32.xlu0 %v337, 28
        %v1079 = vpop.permute.xlu0 %1078
        %1080 = vrot.lane.b32.xlu0 %v340, 28
        %v1081 = vpop.permute.xlu0 %1080
        %1082 = vrot.lane.b32.xlu0 %v342, 28
        %v1083 = vpop.permute.xlu0 %1082
        %1084 = vrot.lane.b32.xlu0 %v345, 28
        %v1085 = vpop.permute.xlu0 %1084
        %1086 = vrot.lane.b32.xlu0 %v347, 28
        %v1087 = vpop.permute.xlu0 %1086
        %1088 = vrot.lane.b32.xlu0 %v350, 28
        %v1089 = vpop.permute.xlu0 %1088
        %1090 = vrot.lane.b32.xlu0 %v352, 28
        %v1091 = vpop.permute.xlu0 %1090
        %1092 = vrot.lane.b32.xlu0 %v439, 28
        %v1093 = vpop.permute.xlu0 %1092
        %1094 = vrot.lane.b32.xlu0 %v441, 28
        %v1095 = vpop.permute.xlu0 %1094
        %1096 = vrot.lane.b32.xlu0 %v452, 28
        %v1097 = vpop.permute.xlu0 %1096
        %1098 = vrot.lane.b32.xlu0 %v454, 28
        %v1099 = vpop.permute.xlu0 %1098
        %1132 = vrot.lane.b32.xlu0 %v366, 32
        %v1133 = vpop.permute.xlu0 %1132
        %1134 = vrot.lane.b32.xlu0 %v368, 32
        %v1135 = vpop.permute.xlu0 %1134
        %1136 = vrot.lane.b32.xlu0 %v371, 32
        %v1137 = vpop.permute.xlu0 %1136
        %1138 = vrot.lane.b32.xlu0 %v373, 32
        %v1139 = vpop.permute.xlu0 %1138
        %1140 = vrot.lane.b32.xlu0 %v376, 32
        %v1141 = vpop.permute.xlu0 %1140
        %1142 = vrot.lane.b32.xlu0 %v378, 32
        %v1143 = vpop.permute.xlu0 %1142
        %1144 = vrot.lane.b32.xlu0 %v381, 32
        %v1145 = vpop.permute.xlu0 %1144
        %1146 = vrot.lane.b32.xlu0 %v383, 32
        %v1147 = vpop.permute.xlu0 %1146
        %1148 = vrot.lane.b32.xlu0 %v386, 32
        %v1149 = vpop.permute.xlu0 %1148
        %1150 = vrot.lane.b32.xlu0 %v388, 32
        %v1151 = vpop.permute.xlu0 %1150
        %1152 = vrot.lane.b32.xlu0 %v391, 32
        %v1153 = vpop.permute.xlu0 %1152
        %1154 = vrot.lane.b32.xlu0 %v393, 32
        %v1155 = vpop.permute.xlu0 %1154
        %1156 = vrot.lane.b32.xlu0 %v396, 32
        %v1157 = vpop.permute.xlu0 %1156
        %1158 = vrot.lane.b32.xlu0 %v398, 32
        %v1159 = vpop.permute.xlu0 %1158
        %1160 = vrot.lane.b32.xlu0 %v401, 32
        %v1161 = vpop.permute.xlu0 %1160
        %1162 = vrot.lane.b32.xlu0 %v403, 32
        %v1163 = vpop.permute.xlu0 %1162
        %1164 = vrot.lane.b32.xlu0 %v406, 32
        %v1165 = vpop.permute.xlu0 %1164
        %1166 = vrot.lane.b32.xlu0 %v408, 32
        %v1167 = vpop.permute.xlu0 %1166
        %1168 = vrot.lane.b32.xlu0 %v411, 32
        %v1169 = vpop.permute.xlu0 %1168
        %1170 = vrot.lane.b32.xlu0 %v413, 32
        %v1171 = vpop.permute.xlu0 %1170
        %1172 = vrot.lane.b32.xlu0 %v416, 32
        %v1173 = vpop.permute.xlu0 %1172
        %1174 = vrot.lane.b32.xlu0 %v418, 32
        %v1175 = vpop.permute.xlu0 %1174
        %1176 = vrot.lane.b32.xlu0 %v421, 32
        %v1177 = vpop.permute.xlu0 %1176
        %1178 = vrot.lane.b32.xlu0 %v423, 32
        %v1179 = vpop.permute.xlu0 %1178
        %1180 = vrot.lane.b32.xlu0 %v426, 32
        %v1181 = vpop.permute.xlu0 %1180
        %1182 = vrot.lane.b32.xlu0 %v428, 32
        %v1183 = vpop.permute.xlu0 %1182
        %1184 = vrot.lane.b32.xlu0 %v431, 32
        %v1185 = vpop.permute.xlu0 %1184
        %1186 = vrot.lane.b32.xlu0 %v433, 32
        %v1187 = vpop.permute.xlu0 %1186
        %1188 = vrot.lane.b32.xlu0 %v444, 32
        %v1189 = vpop.permute.xlu0 %1188
        %1190 = vrot.lane.b32.xlu0 %v446, 32
        %v1191 = vpop.permute.xlu0 %1190
        %1192 = vrot.lane.b32.xlu0 %v457, 32
        %v1193 = vpop.permute.xlu0 %1192
        %1194 = vrot.lane.b32.xlu0 %v459, 32
        %v1195 = vpop.permute.xlu0 %1194
        %vm1228 = vcmask 31744
        %v1229 = vsel %vm1228, %v170, %v461
        %v1230 = vsel %vm1228, %v171, %v463
        %v1231 = vsel %vm1228, %v173, %v465
        %v1232 = vsel %vm1228, %v174, %v467
        %v1233 = vsel %vm1228, %v176, %v469
        %v1234 = vsel %vm1228, %v177, %v471
        %v1235 = vsel %vm1228, %v179, %v473
        %v1236 = vsel %vm1228, %v180, %v475
        %v1237 = vsel %vm1228, %v182, %v477
        %v1238 = vsel %vm1228, %v183, %v479
        %v1239 = vsel %vm1228, %v185, %v481
        %v1240 = vsel %vm1228, %v186, %v483
        %v1241 = vsel %vm1228, %v188, %v485
        %v1242 = vsel %vm1228, %v189, %v487
        %v1243 = vsel %vm1228, %v191, %v489
        %v1244 = vsel %vm1228, %v192, %v491
        %v1245 = vsel %vm1228, %v194, %v493
        %v1246 = vsel %vm1228, %v195, %v495
        %v1247 = vsel %vm1228, %v197, %v497
        %v1248 = vsel %vm1228, %v198, %v499
        %v1249 = vsel %vm1228, %v200, %v501
        %v1250 = vsel %vm1228, %v201, %v503
        %v1251 = vsel %vm1228, %v203, %v505
        %v1252 = vsel %vm1228, %v204, %v507
        %v1253 = vsel %vm1228, %v206, %v509
        %v1254 = vsel %vm1228, %v207, %v511
        %v1255 = vsel %vm1228, %v209, %v513
        %v1256 = vsel %vm1228, %v210, %v515
        %v1257 = vsel %vm1228, %v212, %v517
        %v1258 = vsel %vm1228, %v213, %v519
        %v1259 = vsel %vm1228, %v215, %v521
        %v1260 = vsel %vm1228, %v216, %v523
        %vm1261 = vcmask 64512
        %v1262 = vsel %vm1261, %v1229, %v557
        %v1263 = vsel %vm1261, %v1230, %v559
        %v1264 = vsel %vm1261, %v1231, %v561
        %v1265 = vsel %vm1261, %v1232, %v563
        %v1266 = vsel %vm1261, %v1233, %v565
        %v1267 = vsel %vm1261, %v1234, %v567
        %v1268 = vsel %vm1261, %v1235, %v569
        %v1269 = vsel %vm1261, %v1236, %v571
        %v1270 = vsel %vm1261, %v1237, %v573
        %v1271 = vsel %vm1261, %v1238, %v575
        %v1272 = vsel %vm1261, %v1239, %v577
        %v1273 = vsel %vm1261, %v1240, %v579
        %v1274 = vsel %vm1261, %v1241, %v581
        %v1275 = vsel %vm1261, %v1242, %v583
        %v1276 = vsel %vm1261, %v1243, %v585
        %v1277 = vsel %vm1261, %v1244, %v587
        %v1278 = vsel %vm1261, %v1245, %v589
        %v1279 = vsel %vm1261, %v1246, %v591
        %v1280 = vsel %vm1261, %v1247, %v593
        %v1281 = vsel %vm1261, %v1248, %v595
        %v1282 = vsel %vm1261, %v1249, %v597
        %v1283 = vsel %vm1261, %v1250, %v599
        %v1284 = vsel %vm1261, %v1251, %v601
        %v1285 = vsel %vm1261, %v1252, %v603
        %v1286 = vsel %vm1261, %v1253, %v605
        %v1287 = vsel %vm1261, %v1254, %v607
        %v1288 = vsel %vm1261, %v1255, %v609
        %v1289 = vsel %vm1261, %v1256, %v611
        %v1290 = vsel %vm1261, %v1257, %v613
        %v1291 = vsel %vm1261, %v1258, %v615
        %v1292 = vsel %vm1261, %v1259, %v617
        %v1293 = vsel %vm1261, %v1260, %v619
        %vm1294 = vcmask 97280
        %v1295 = vsel %vm1294, %v1262, %v653
        %v1296 = vsel %vm1294, %v1263, %v655
        %v1297 = vsel %vm1294, %v1264, %v657
        %v1298 = vsel %vm1294, %v1265, %v659
        %v1299 = vsel %vm1294, %v1266, %v661
        %v1300 = vsel %vm1294, %v1267, %v663
        %v1301 = vsel %vm1294, %v1268, %v665
        %v1302 = vsel %vm1294, %v1269, %v667
        %v1303 = vsel %vm1294, %v1270, %v669
        %v1304 = vsel %vm1294, %v1271, %v671
        %v1305 = vsel %vm1294, %v1272, %v673
        %v1306 = vsel %vm1294, %v1273, %v675
        %v1307 = vsel %vm1294, %v1274, %v677
        %v1308 = vsel %vm1294, %v1275, %v679
        %v1309 = vsel %vm1294, %v1276, %v681
        %v1310 = vsel %vm1294, %v1277, %v683
        %v1311 = vsel %vm1294, %v1278, %v685
        %v1312 = vsel %vm1294, %v1279, %v687
        %v1313 = vsel %vm1294, %v1280, %v689
        %v1314 = vsel %vm1294, %v1281, %v691
        %v1315 = vsel %vm1294, %v1282, %v693
        %v1316 = vsel %vm1294, %v1283, %v695
        %v1317 = vsel %vm1294, %v1284, %v697
        %v1318 = vsel %vm1294, %v1285, %v699
        %v1319 = vsel %vm1294, %v1286, %v701
        %v1320 = vsel %vm1294, %v1287, %v703
        %v1321 = vsel %vm1294, %v1288, %v705
        %v1322 = vsel %vm1294, %v1289, %v707
        %v1323 = vsel %vm1294, %v1290, %v709
        %v1324 = vsel %vm1294, %v1291, %v711
        %v1325 = vsel %vm1294, %v1292, %v713
        %v1326 = vsel %vm1294, %v1293, %v715
        %vm1327 = vcmask 130048
        %v1328 = vsel %vm1327, %v1295, %v749
        %v1329 = vsel %vm1327, %v1296, %v751
        %v1330 = vsel %vm1327, %v1297, %v753
        %v1331 = vsel %vm1327, %v1298, %v755
        %v1332 = vsel %vm1327, %v1299, %v757
        %v1333 = vsel %vm1327, %v1300, %v759
        %v1334 = vsel %vm1327, %v1301, %v761
        %v1335 = vsel %vm1327, %v1302, %v763
        %v1336 = vsel %vm1327, %v1303, %v765
        %v1337 = vsel %vm1327, %v1304, %v767
        %v1338 = vsel %vm1327, %v1305, %v769
        %v1339 = vsel %vm1327, %v1306, %v771
        %v1340 = vsel %vm1327, %v1307, %v773
        %v1341 = vsel %vm1327, %v1308, %v775
        %v1342 = vsel %vm1327, %v1309, %v777
        %v1343 = vsel %vm1327, %v1310, %v779
        %v1344 = vsel %vm1327, %v1311, %v781
        %v1345 = vsel %vm1327, %v1312, %v783
        %v1346 = vsel %vm1327, %v1313, %v785
        %v1347 = vsel %vm1327, %v1314, %v787
        %v1348 = vsel %vm1327, %v1315, %v789
        %v1349 = vsel %vm1327, %v1316, %v791
        %v1350 = vsel %vm1327, %v1317, %v793
        %v1351 = vsel %vm1327, %v1318, %v795
        %v1352 = vsel %vm1327, %v1319, %v797
        %v1353 = vsel %vm1327, %v1320, %v799
        %v1354 = vsel %vm1327, %v1321, %v801
        %v1355 = vsel %vm1327, %v1322, %v803
        %v1356 = vsel %vm1327, %v1323, %v805
        %v1357 = vsel %vm1327, %v1324, %v807
        %v1358 = vsel %vm1327, %v1325, %v809
        %v1359 = vsel %vm1327, %v1326, %v811
        %vm1360 = vcmask 162816
        %v1361 = vsel %vm1360, %v1328, %v845
        %v1362 = vsel %vm1360, %v1329, %v847
        %v1363 = vsel %vm1360, %v1330, %v849
        %v1364 = vsel %vm1360, %v1331, %v851
        %v1365 = vsel %vm1360, %v1332, %v853
        %v1366 = vsel %vm1360, %v1333, %v855
        %v1367 = vsel %vm1360, %v1334, %v857
        %v1368 = vsel %vm1360, %v1335, %v859
        %v1369 = vsel %vm1360, %v1336, %v861
        %v1370 = vsel %vm1360, %v1337, %v863
        %v1371 = vsel %vm1360, %v1338, %v865
        %v1372 = vsel %vm1360, %v1339, %v867
        %v1373 = vsel %vm1360, %v1340, %v869
        %v1374 = vsel %vm1360, %v1341, %v871
        %v1375 = vsel %vm1360, %v1342, %v873
        %v1376 = vsel %vm1360, %v1343, %v875
        %v1377 = vsel %vm1360, %v1344, %v877
        %v1378 = vsel %vm1360, %v1345, %v879
        %v1379 = vsel %vm1360, %v1346, %v881
        %v1380 = vsel %vm1360, %v1347, %v883
        %v1381 = vsel %vm1360, %v1348, %v885
        %v1382 = vsel %vm1360, %v1349, %v887
        %v1383 = vsel %vm1360, %v1350, %v889
        %v1384 = vsel %vm1360, %v1351, %v891
        %v1385 = vsel %vm1360, %v1352, %v893
        %v1386 = vsel %vm1360, %v1353, %v895
        %v1387 = vsel %vm1360, %v1354, %v897
        %v1388 = vsel %vm1360, %v1355, %v899
        %v1389 = vsel %vm1360, %v1356, %v901
        %v1390 = vsel %vm1360, %v1357, %v903
        %v1391 = vsel %vm1360, %v1358, %v905
        %v1392 = vsel %vm1360, %v1359, %v907
        %vm1393 = vcmask 195584
        %v1394 = vsel %vm1393, %v1361, %v941
        %v1395 = vsel %vm1393, %v1362, %v943
        %v1396 = vsel %vm1393, %v1363, %v945
        %v1397 = vsel %vm1393, %v1364, %v947
        %v1398 = vsel %vm1393, %v1365, %v949
        %v1399 = vsel %vm1393, %v1366, %v951
        %v1400 = vsel %vm1393, %v1367, %v953
        %v1401 = vsel %vm1393, %v1368, %v955
        %v1402 = vsel %vm1393, %v1369, %v957
        %v1403 = vsel %vm1393, %v1370, %v959
        %v1404 = vsel %vm1393, %v1371, %v961
        %v1405 = vsel %vm1393, %v1372, %v963
        %v1406 = vsel %vm1393, %v1373, %v965
        %v1407 = vsel %vm1393, %v1374, %v967
        %v1408 = vsel %vm1393, %v1375, %v969
        %v1409 = vsel %vm1393, %v1376, %v971
        %v1410 = vsel %vm1393, %v1377, %v973
        %v1411 = vsel %vm1393, %v1378, %v975
        %v1412 = vsel %vm1393, %v1379, %v977
        %v1413 = vsel %vm1393, %v1380, %v979
        %v1414 = vsel %vm1393, %v1381, %v981
        %v1415 = vsel %vm1393, %v1382, %v983
        %v1416 = vsel %vm1393, %v1383, %v985
        %v1417 = vsel %vm1393, %v1384, %v987
        %v1418 = vsel %vm1393, %v1385, %v989
        %v1419 = vsel %vm1393, %v1386, %v991
        %v1420 = vsel %vm1393, %v1387, %v993
        %v1421 = vsel %vm1393, %v1388, %v995
        %v1422 = vsel %vm1393, %v1389, %v997
        %v1423 = vsel %vm1393, %v1390, %v999
        %v1424 = vsel %vm1393, %v1391, %v1001
        %v1425 = vsel %vm1393, %v1392, %v1003
        %vm1426 = vcmask 228352
        %v1427 = vsel %vm1426, %v1394, %v1037
        %v1428 = vsel %vm1426, %v1395, %v1039
        %v1429 = vsel %vm1426, %v1396, %v1041
        %v1430 = vsel %vm1426, %v1397, %v1043
        %v1431 = vsel %vm1426, %v1398, %v1045
        %v1432 = vsel %vm1426, %v1399, %v1047
        %v1433 = vsel %vm1426, %v1400, %v1049
        %v1434 = vsel %vm1426, %v1401, %v1051
        %v1435 = vsel %vm1426, %v1402, %v1053
        %v1436 = vsel %vm1426, %v1403, %v1055
        %v1437 = vsel %vm1426, %v1404, %v1057
        %v1438 = vsel %vm1426, %v1405, %v1059
        %v1439 = vsel %vm1426, %v1406, %v1061
        %v1440 = vsel %vm1426, %v1407, %v1063
        %v1441 = vsel %vm1426, %v1408, %v1065
        %v1442 = vsel %vm1426, %v1409, %v1067
        %v1443 = vsel %vm1426, %v1410, %v1069
        %v1444 = vsel %vm1426, %v1411, %v1071
        %v1445 = vsel %vm1426, %v1412, %v1073
        %v1446 = vsel %vm1426, %v1413, %v1075
        %v1447 = vsel %vm1426, %v1414, %v1077
        %v1448 = vsel %vm1426, %v1415, %v1079
        %v1449 = vsel %vm1426, %v1416, %v1081
        %v1450 = vsel %vm1426, %v1417, %v1083
        %v1451 = vsel %vm1426, %v1418, %v1085
        %v1452 = vsel %vm1426, %v1419, %v1087
        %v1453 = vsel %vm1426, %v1420, %v1089
        %v1454 = vsel %vm1426, %v1421, %v1091
        %v1455 = vsel %vm1426, %v1422, %v1093
        %v1456 = vsel %vm1426, %v1423, %v1095
        %v1457 = vsel %vm1426, %v1424, %v1097
        %v1458 = vsel %vm1426, %v1425, %v1099
        %vm1459 = vcmask 261120
        %v1460 = vsel %vm1459, %v1427, %v1133
        %v1461 = vsel %vm1459, %v1428, %v1135
        %v1462 = vsel %vm1459, %v1429, %v1137
        %v1463 = vsel %vm1459, %v1430, %v1139
        %v1464 = vsel %vm1459, %v1431, %v1141
        %v1465 = vsel %vm1459, %v1432, %v1143
        %v1466 = vsel %vm1459, %v1433, %v1145
        %v1467 = vsel %vm1459, %v1434, %v1147
        %v1468 = vsel %vm1459, %v1435, %v1149
        %v1469 = vsel %vm1459, %v1436, %v1151
        %v1470 = vsel %vm1459, %v1437, %v1153
        %v1471 = vsel %vm1459, %v1438, %v1155
        %v1472 = vsel %vm1459, %v1439, %v1157
        %v1473 = vsel %vm1459, %v1440, %v1159
        %v1474 = vsel %vm1459, %v1441, %v1161
        %v1475 = vsel %vm1459, %v1442, %v1163
        %v1476 = vsel %vm1459, %v1443, %v1165
        %v1477 = vsel %vm1459, %v1444, %v1167
        %v1478 = vsel %vm1459, %v1445, %v1169
        %v1479 = vsel %vm1459, %v1446, %v1171
        %v1480 = vsel %vm1459, %v1447, %v1173
        %v1481 = vsel %vm1459, %v1448, %v1175
        %v1482 = vsel %vm1459, %v1449, %v1177
        %v1483 = vsel %vm1459, %v1450, %v1179
        %v1484 = vsel %vm1459, %v1451, %v1181
        %v1485 = vsel %vm1459, %v1452, %v1183
        %v1486 = vsel %vm1459, %v1453, %v1185
        %v1487 = vsel %vm1459, %v1454, %v1187
        %v1488 = vsel %vm1459, %v1455, %v1189
        %v1489 = vsel %vm1459, %v1456, %v1191
        %v1490 = vsel %vm1459, %v1457, %v1193
        %v1491 = vsel %vm1459, %v1458, %v1195
        %v1492 = vld [vmem:[%s1] sm:$0xff]
        %v1493 = vld [vmem:[%s1 + $0x8] sm:$0xff]
        %v1494 = vld [vmem:[%s1 + $0x10] sm:$0xff]
        %v1495 = vld [vmem:[%s1 + $0x18] sm:$0xff]
        %v1496 = vld [vmem:[%s1 + $0x20] sm:$0xf]
        %v1497 = vld [vmem:[%s2] sm:$0xff]
        %v1498 = vld [vmem:[%s2 + $0x8] sm:$0xff]
        %v1499 = vld [vmem:[%s2 + $0x10] sm:$0xff]
        %v1500 = vld [vmem:[%s2 + $0x18] sm:$0xff]
        %v1501 = vld [vmem:[%s2 + $0x20] sm:$0xff]
        %v1502 = vld [vmem:[%s2 + $0x28] sm:$0xff]
        %v1503 = vld [vmem:[%s2 + $0x30] sm:$0xff]
        %v1504 = vld [vmem:[%s2 + $0x38] sm:$0xff]
        %v1505 = vld [vmem:[%s2 + $0x40] sm:$0xff]
        %v1506 = vld [vmem:[%s2 + $0x48] sm:$0xff]
        %v1507 = vld [vmem:[%s2 + $0x50] sm:$0xff]
        %v1508 = vld [vmem:[%s2 + $0x58] sm:$0xff]
        %v1509 = vld [vmem:[%s2 + $0x60] sm:$0xff]
        %v1510 = vld [vmem:[%s2 + $0x68] sm:$0xff]
        %v1511 = vld [vmem:[%s2 + $0x70] sm:$0xff]
        %v1512 = vld [vmem:[%s2 + $0x78] sm:$0xff]
        %v1513 = vld [vmem:[%s2 + $0x80] sm:$0xff]
        %v1514 = vld [vmem:[%s2 + $0x88] sm:$0xff]
        %v1515 = vld [vmem:[%s2 + $0x90] sm:$0xff]
        %v1516 = vld [vmem:[%s2 + $0x98] sm:$0xff]
        %v1517 = vld [vmem:[%s2 + $0xa0] sm:$0xff]
        %v1518 = vld [vmem:[%s2 + $0xa8] sm:$0xff]
        %v1519 = vld [vmem:[%s2 + $0xb0] sm:$0xff]
        %v1520 = vld [vmem:[%s2 + $0xb8] sm:$0xff]
        %v1521 = vld [vmem:[%s2 + $0xc0] sm:$0xff]
        %v1522 = vld [vmem:[%s2 + $0xc8] sm:$0xff]
        %v1523 = vld [vmem:[%s2 + $0xd0] sm:$0xff]
        %v1524 = vld [vmem:[%s2 + $0xd8] sm:$0xff]
        %v1525 = vld [vmem:[%s2 + $0xe0] sm:$0xff]
        %v1526 = vld [vmem:[%s2 + $0xe8] sm:$0xff]
        %v1527 = vld [vmem:[%s2 + $0xf0] sm:$0xff]
        %v1528 = vld [vmem:[%s2 + $0xf8] sm:$0xff]
        %vm1529 = vcmask 293888
        %v1531 = vsel %vm1529, %v1460, 0
        %v1534 = vsel %vm1529, %v1461, 0
        %v1537 = vsel %vm1529, %v1462, 0
        %v1540 = vsel %vm1529, %v1463, 0
        %v1543 = vsel %vm1529, %v1464, 0
        %v1546 = vsel %vm1529, %v1465, 0
        %v1549 = vsel %vm1529, %v1466, 0
        %v1552 = vsel %vm1529, %v1467, 0
        %v1555 = vsel %vm1529, %v1468, 0
        %v1558 = vsel %vm1529, %v1469, 0
        %v1561 = vsel %vm1529, %v1470, 0
        %v1564 = vsel %vm1529, %v1471, 0
        %v1567 = vsel %vm1529, %v1472, 0
        %v1570 = vsel %vm1529, %v1473, 0
        %v1573 = vsel %vm1529, %v1474, 0
        %v1576 = vsel %vm1529, %v1475, 0
        %v1579 = vsel %vm1529, %v1476, 0
        %v1582 = vsel %vm1529, %v1477, 0
        %v1585 = vsel %vm1529, %v1478, 0
        %v1588 = vsel %vm1529, %v1479, 0
        %v1591 = vsel %vm1529, %v1480, 0
        %v1594 = vsel %vm1529, %v1481, 0
        %v1597 = vsel %vm1529, %v1482, 0
        %v1600 = vsel %vm1529, %v1483, 0
        %v1603 = vsel %vm1529, %v1484, 0
        %v1606 = vsel %vm1529, %v1485, 0
        %v1609 = vsel %vm1529, %v1486, 0
        %v1612 = vsel %vm1529, %v1487, 0
        %v1615 = vsel %vm1529, %v1488, 0
        %v1618 = vsel %vm1529, %v1489, 0
        %v1621 = vsel %vm1529, %v1490, 0
        %v1624 = vsel %vm1529, %v1491, 0
        %vm1626 = vcmask 1043456
        %v1628 = vsel %vm1626, %v1496, 0
        %1630 = vmatprep.subr.mxu0 0.0
        %1631 = vmatpush1.msra.mxu0 %v1492
        %1632 = vmatprep.subr.mxu0 0.0
        %1633 = vmatpush1.msra.mxu0 %v1493
        %1634 = vmatprep.subr.mxu0 0.0
        %1635 = vmatpush1.msra.mxu0 %v1494
        %1636 = vmatprep.subr.mxu0 0.0
        %1637 = vmatpush1.msra.mxu0 %v1495
        %1638 = vmatprep.subr.mxu0 0.0
        %1639 = vmatpush1.msra.mxu0 %v1628
        %1640 = vmatprep.subr.mxu0 0.0
        %1641 = vmatpush1.msra.mxu0 0.0
        %1642 = vmatprep.subr.mxu0 0.0
        %1643 = vmatpush1.msra.mxu0 0.0
        %1644 = vmatprep.subr.mxu0 0.0
        %1645 = vmatpush1.msra.mxu0 0.0
        %1646 = vmatprep.subr.mxu0 0.0
        %1647 = vmatpush1.msra.mxu0 0.0
        %1648 = vmatprep.subr.mxu0 0.0
        %1649 = vmatpush1.msra.mxu0 0.0
        %1650 = vmatprep.subr.mxu0 0.0
        %1651 = vmatpush1.msra.mxu0 0.0
        %1652 = vmatprep.subr.mxu0 0.0
        %1653 = vmatpush1.msra.mxu0 0.0
        %1654 = vmatprep.subr.mxu0 0.0
        %1655 = vmatpush1.msra.mxu0 0.0
        %1656 = vmatprep.subr.mxu0 0.0
        %1657 = vmatpush1.msra.mxu0 0.0
        %1658 = vmatprep.subr.mxu0 0.0
        %1659 = vmatpush1.msra.mxu0 0.0
        %1660 = vmatprep.subr.mxu0 0.0
        %1661 = vmatpush1.msra.mxu0 0.0
        %1662 = vmatprep.subr.mxu0 0.0
        %1663 = vmatpush1.msra.mxu0 0.0
        %1664 = vmatprep.subr.mxu0 0.0
        %1665 = vmatpush1.msra.mxu0 0.0
        %1666 = vmatprep.subr.mxu0 0.0
        %1667 = vmatpush1.msra.mxu0 0.0
        %1668 = vmatprep.subr.mxu0 0.0
        %1669 = vmatpush1.msra.mxu0 0.0
        %1670 = vmatprep.subr.mxu0 0.0
        %1671 = vmatpush1.msra.mxu0 0.0
        %1672 = vmatprep.subr.mxu0 0.0
        %1673 = vmatpush1.msra.mxu0 0.0
        %1674 = vmatprep.subr.mxu0 0.0
        %1675 = vmatpush1.msra.mxu0 0.0
        %1676 = vmatprep.subr.mxu0 0.0
        %1677 = vmatpush1.msra.mxu0 0.0
        %1678 = vmatprep.subr.mxu0 0.0
        %1679 = vmatpush1.msra.mxu0 0.0
        %1680 = vmatprep.subr.mxu0 0.0
        %1681 = vmatpush1.msra.mxu0 0.0
        %1682 = vmatprep.subr.mxu0 0.0
        %1683 = vmatpush1.msra.mxu0 0.0
        %1684 = vmatprep.subr.mxu0 0.0
        %1685 = vmatpush1.msra.mxu0 0.0
        %1686 = vmatprep.subr.mxu0 0.0
        %1687 = vmatpush1.msra.mxu0 0.0
        %1688 = vmatprep.subr.mxu0 0.0
        %1689 = vmatpush1.msra.mxu0 0.0
        %1690 = vmatprep.subr.mxu0 0.0
        %1691 = vmatpush1.msra.mxu0 0.0
        %1692 = vmatprep.subr.mxu0 0.0
        %1693 = vmatpush1.msra.mxu0 0.0
        %1694 = vmatprep.mubr.f32.mxu0 0.0
        %1695 = vmatmul.mubr.f32.gmra.mrb[0].mxu0 %v1531
        %v1696 = vpop.f32.mrb[0].mxu0
        %v1697 = vadd.f32 %v1497, %v1696
        %v1698 = vpop.f32.mrb[0].mxu0
        %1699 = vmatprep.mubr.f32.mxu0 0.0
        %1700 = vmatmul.mubr.f32.gmra.mrb[0].mxu0 %v1534
        %v1701 = vpop.f32.mrb[0].mxu0
        %v1702 = vadd.f32 %v1498, %v1701
        %v1703 = vpop.f32.mrb[0].mxu0
        %1704 = vmatprep.mubr.f32.mxu0 0.0
        %1705 = vmatmul.mubr.f32.gmra.mrb[0].mxu0 %v1537
        %v1706 = vpop.f32.mrb[0].mxu0
        %v1707 = vadd.f32 %v1499, %v1706
        %v1708 = vpop.f32.mrb[0].mxu0
        %1709 = vmatprep.mubr.f32.mxu0 0.0
        %1710 = vmatmul.mubr.f32.gmra.mrb[0].mxu0 %v1540
        %v1711 = vpop.f32.mrb[0].mxu0
        %v1712 = vadd.f32 %v1500, %v1711
        %v1713 = vpop.f32.mrb[0].mxu0
        %1714 = vmatprep.mubr.f32.mxu0 0.0
        %1715 = vmatmul.mubr.f32.gmra.mrb[0].mxu0 %v1543
        %v1716 = vpop.f32.mrb[0].mxu0
        %v1717 = vadd.f32 %v1501, %v1716
        %v1718 = vpop.f32.mrb[0].mxu0
        %1719 = vmatprep.mubr.f32.mxu0 0.0
        %1720 = vmatmul.mubr.f32.gmra.mrb[0].mxu0 %v1546
        %v1721 = vpop.f32.mrb[0].mxu0
        %v1722 = vadd.f32 %v1502, %v1721
        %v1723 = vpop.f32.mrb[0].mxu0
        %1724 = vmatprep.mubr.f32.mxu0 0.0
        %1725 = vmatmul.mubr.f32.gmra.mrb[0].mxu0 %v1549
        %v1726 = vpop.f32.mrb[0].mxu0
        %v1727 = vadd.f32 %v1503, %v1726
        %v1728 = vpop.f32.mrb[0].mxu0
        %1729 = vmatprep.mubr.f32.mxu0 0.0
        %1730 = vmatmul.mubr.f32.gmra.mrb[0].mxu0 %v1552
        %v1731 = vpop.f32.mrb[0].mxu0
        %v1732 = vadd.f32 %v1504, %v1731
        %v1733 = vpop.f32.mrb[0].mxu0
        %1734 = vmatprep.mubr.f32.mxu0 0.0
        %1735 = vmatmul.mubr.f32.gmra.mrb[0].mxu0 %v1555
        %v1736 = vpop.f32.mrb[0].mxu0
        %v1737 = vadd.f32 %v1505, %v1736
        %v1738 = vpop.f32.mrb[0].mxu0
        %1739 = vmatprep.mubr.f32.mxu0 0.0
        %1740 = vmatmul.mubr.f32.gmra.mrb[0].mxu0 %v1558
        %v1741 = vpop.f32.mrb[0].mxu0
        %v1742 = vadd.f32 %v1506, %v1741
        %v1743 = vpop.f32.mrb[0].mxu0
        %1744 = vmatprep.mubr.f32.mxu0 0.0
        %1745 = vmatmul.mubr.f32.gmra.mrb[0].mxu0 %v1561
        %v1746 = vpop.f32.mrb[0].mxu0
        %v1747 = vadd.f32 %v1507, %v1746
        %v1748 = vpop.f32.mrb[0].mxu0
        %1749 = vmatprep.mubr.f32.mxu0 0.0
        %1750 = vmatmul.mubr.f32.gmra.mrb[0].mxu0 %v1564
        %v1751 = vpop.f32.mrb[0].mxu0
        %v1752 = vadd.f32 %v1508, %v1751
        %v1753 = vpop.f32.mrb[0].mxu0
        %1754 = vmatprep.mubr.f32.mxu0 0.0
        %1755 = vmatmul.mubr.f32.gmra.mrb[0].mxu0 %v1567
        %v1756 = vpop.f32.mrb[0].mxu0
        %v1757 = vadd.f32 %v1509, %v1756
        %v1758 = vpop.f32.mrb[0].mxu0
        %1759 = vmatprep.mubr.f32.mxu0 0.0
        %1760 = vmatmul.mubr.f32.gmra.mrb[0].mxu0 %v1570
        %v1761 = vpop.f32.mrb[0].mxu0
        %v1762 = vadd.f32 %v1510, %v1761
        %v1763 = vpop.f32.mrb[0].mxu0
        %1764 = vmatprep.mubr.f32.mxu0 0.0
        %1765 = vmatmul.mubr.f32.gmra.mrb[0].mxu0 %v1573
        %v1766 = vpop.f32.mrb[0].mxu0
        %v1767 = vadd.f32 %v1511, %v1766
        %v1768 = vpop.f32.mrb[0].mxu0
        %1769 = vmatprep.mubr.f32.mxu0 0.0
        %1770 = vmatmul.mubr.f32.gmra.mrb[0].mxu0 %v1576
        %v1771 = vpop.f32.mrb[0].mxu0
        %v1772 = vadd.f32 %v1512, %v1771
        %v1773 = vpop.f32.mrb[0].mxu0
        %1774 = vmatprep.mubr.f32.mxu0 0.0
        %1775 = vmatmul.mubr.f32.gmra.mrb[0].mxu0 %v1579
        %v1776 = vpop.f32.mrb[0].mxu0
        %v1777 = vadd.f32 %v1513, %v1776
        %v1778 = vpop.f32.mrb[0].mxu0
        %1779 = vmatprep.mubr.f32.mxu0 0.0
        %1780 = vmatmul.mubr.f32.gmra.mrb[0].mxu0 %v1582
        %v1781 = vpop.f32.mrb[0].mxu0
        %v1782 = vadd.f32 %v1514, %v1781
        %v1783 = vpop.f32.mrb[0].mxu0
        %1784 = vmatprep.mubr.f32.mxu0 0.0
        %1785 = vmatmul.mubr.f32.gmra.mrb[0].mxu0 %v1585
        %v1786 = vpop.f32.mrb[0].mxu0
        %v1787 = vadd.f32 %v1515, %v1786
        %v1788 = vpop.f32.mrb[0].mxu0
        %1789 = vmatprep.mubr.f32.mxu0 0.0
        %1790 = vmatmul.mubr.f32.gmra.mrb[0].mxu0 %v1588
        %v1791 = vpop.f32.mrb[0].mxu0
        %v1792 = vadd.f32 %v1516, %v1791
        %v1793 = vpop.f32.mrb[0].mxu0
        %1794 = vmatprep.mubr.f32.mxu0 0.0
        %1795 = vmatmul.mubr.f32.gmra.mrb[0].mxu0 %v1591
        %v1796 = vpop.f32.mrb[0].mxu0
        %v1797 = vadd.f32 %v1517, %v1796
        %v1798 = vpop.f32.mrb[0].mxu0
        %1799 = vmatprep.mubr.f32.mxu0 0.0
        %1800 = vmatmul.mubr.f32.gmra.mrb[0].mxu0 %v1594
        %v1801 = vpop.f32.mrb[0].mxu0
        %v1802 = vadd.f32 %v1518, %v1801
        %v1803 = vpop.f32.mrb[0].mxu0
        %1804 = vmatprep.mubr.f32.mxu0 0.0
        %1805 = vmatmul.mubr.f32.gmra.mrb[0].mxu0 %v1597
        %v1806 = vpop.f32.mrb[0].mxu0
        %v1807 = vadd.f32 %v1519, %v1806
        %v1808 = vpop.f32.mrb[0].mxu0
        %1809 = vmatprep.mubr.f32.mxu0 0.0
        %1810 = vmatmul.mubr.f32.gmra.mrb[0].mxu0 %v1600
        %v1811 = vpop.f32.mrb[0].mxu0
        %v1812 = vadd.f32 %v1520, %v1811
        %v1813 = vpop.f32.mrb[0].mxu0
        %1814 = vmatprep.mubr.f32.mxu0 0.0
        %1815 = vmatmul.mubr.f32.gmra.mrb[0].mxu0 %v1603
        %v1816 = vpop.f32.mrb[0].mxu0
        %v1817 = vadd.f32 %v1521, %v1816
        %v1818 = vpop.f32.mrb[0].mxu0
        %1819 = vmatprep.mubr.f32.mxu0 0.0
        %1820 = vmatmul.mubr.f32.gmra.mrb[0].mxu0 %v1606
        %v1821 = vpop.f32.mrb[0].mxu0
        %v1822 = vadd.f32 %v1522, %v1821
        %v1823 = vpop.f32.mrb[0].mxu0
        %1824 = vmatprep.mubr.f32.mxu0 0.0
        %1825 = vmatmul.mubr.f32.gmra.mrb[0].mxu0 %v1609
        %v1826 = vpop.f32.mrb[0].mxu0
        %v1827 = vadd.f32 %v1523, %v1826
        %v1828 = vpop.f32.mrb[0].mxu0
        %1829 = vmatprep.mubr.f32.mxu0 0.0
        %1830 = vmatmul.mubr.f32.gmra.mrb[0].mxu0 %v1612
        %v1831 = vpop.f32.mrb[0].mxu0
        %v1832 = vadd.f32 %v1524, %v1831
        %v1833 = vpop.f32.mrb[0].mxu0
        %1834 = vmatprep.mubr.f32.mxu0 0.0
        %1835 = vmatmul.mubr.f32.gmra.mrb[0].mxu0 %v1615
        %v1836 = vpop.f32.mrb[0].mxu0
        %v1837 = vadd.f32 %v1525, %v1836
        %v1838 = vpop.f32.mrb[0].mxu0
        %1839 = vmatprep.mubr.f32.mxu0 0.0
        %1840 = vmatmul.mubr.f32.gmra.mrb[0].mxu0 %v1618
        %v1841 = vpop.f32.mrb[0].mxu0
        %v1842 = vadd.f32 %v1526, %v1841
        %v1843 = vpop.f32.mrb[0].mxu0
        %1844 = vmatprep.mubr.f32.mxu0 0.0
        %1845 = vmatmul.mubr.f32.gmra.mrb[0].mxu0 %v1621
        %v1846 = vpop.f32.mrb[0].mxu0
        %v1847 = vadd.f32 %v1527, %v1846
        %v1848 = vpop.f32.mrb[0].mxu0
        %1849 = vmatprep.mubr.f32.mxu0 0.0
        %1850 = vmatmul.mubr.f32.gmra.mrb[0].mxu0 %v1624
        %v1851 = vpop.f32.mrb[0].mxu0
        %v1852 = vadd.f32 %v1528, %v1851
        %v1853 = vpop.f32.mrb[0].mxu0
        %1854 = vdwg.mxu0
        %vm1855 = vcmp.ge.f32.partialorder %v1697, 0.0
        %vm1856 = vcmp.ge.f32.partialorder %v1702, 0.0
        %vm1857 = vcmp.ge.f32.partialorder %v1707, 0.0
        %vm1858 = vcmp.ge.f32.partialorder %v1712, 0.0
        %vm1859 = vcmp.ge.f32.partialorder %v1717, 0.0
        %vm1860 = vcmp.ge.f32.partialorder %v1722, 0.0
        %vm1861 = vcmp.ge.f32.partialorder %v1727, 0.0
        %vm1862 = vcmp.ge.f32.partialorder %v1732, 0.0
        %vm1863 = vcmp.ge.f32.partialorder %v1737, 0.0
        %vm1864 = vcmp.ge.f32.partialorder %v1742, 0.0
        %vm1865 = vcmp.ge.f32.partialorder %v1747, 0.0
        %vm1866 = vcmp.ge.f32.partialorder %v1752, 0.0
        %vm1867 = vcmp.ge.f32.partialorder %v1757, 0.0
        %vm1868 = vcmp.ge.f32.partialorder %v1762, 0.0
        %vm1869 = vcmp.ge.f32.partialorder %v1767, 0.0
        %vm1870 = vcmp.ge.f32.partialorder %v1772, 0.0
        %vm1871 = vcmp.ge.f32.partialorder %v1777, 0.0
        %vm1872 = vcmp.ge.f32.partialorder %v1782, 0.0
        %vm1873 = vcmp.ge.f32.partialorder %v1787, 0.0
        %vm1874 = vcmp.ge.f32.partialorder %v1792, 0.0
        %vm1875 = vcmp.ge.f32.partialorder %v1797, 0.0
        %vm1876 = vcmp.ge.f32.partialorder %v1802, 0.0
        %vm1877 = vcmp.ge.f32.partialorder %v1807, 0.0
        %vm1878 = vcmp.ge.f32.partialorder %v1812, 0.0
        %vm1879 = vcmp.ge.f32.partialorder %v1817, 0.0
        %vm1880 = vcmp.ge.f32.partialorder %v1822, 0.0
        %vm1881 = vcmp.ge.f32.partialorder %v1827, 0.0
        %vm1882 = vcmp.ge.f32.partialorder %v1832, 0.0
        %vm1883 = vcmp.ge.f32.partialorder %v1837, 0.0
        %vm1884 = vcmp.ge.f32.partialorder %v1842, 0.0
        %vm1885 = vcmp.ge.f32.partialorder %v1847, 0.0
        %vm1886 = vcmp.ge.f32.partialorder %v1852, 0.0
        %v1887 = vmul.f32 %v1697, 0.1
        %v1888 = vmul.f32 %v1702, 0.1
        %v1889 = vmul.f32 %v1707, 0.1
        %v1890 = vmul.f32 %v1712, 0.1
        %v1891 = vmul.f32 %v1717, 0.1
        %v1892 = vmul.f32 %v1722, 0.1
        %v1893 = vmul.f32 %v1727, 0.1
        %v1894 = vmul.f32 %v1732, 0.1
        %v1895 = vmul.f32 %v1737, 0.1
        %v1896 = vmul.f32 %v1742, 0.1
        %v1897 = vmul.f32 %v1747, 0.1
        %v1898 = vmul.f32 %v1752, 0.1
        %v1899 = vmul.f32 %v1757, 0.1
        %v1900 = vmul.f32 %v1762, 0.1
        %v1901 = vmul.f32 %v1767, 0.1
        %v1902 = vmul.f32 %v1772, 0.1
        %v1903 = vmul.f32 %v1777, 0.1
        %v1904 = vmul.f32 %v1782, 0.1
        %v1905 = vmul.f32 %v1787, 0.1
        %v1906 = vmul.f32 %v1792, 0.1
        %v1907 = vmul.f32 %v1797, 0.1
        %v1908 = vmul.f32 %v1802, 0.1
        %v1909 = vmul.f32 %v1807, 0.1
        %v1910 = vmul.f32 %v1812, 0.1
        %v1911 = vmul.f32 %v1817, 0.1
        %v1912 = vmul.f32 %v1822, 0.1
        %v1913 = vmul.f32 %v1827, 0.1
        %v1914 = vmul.f32 %v1832, 0.1
        %v1915 = vmul.f32 %v1837, 0.1
        %v1916 = vmul.f32 %v1842, 0.1
        %v1917 = vmul.f32 %v1847, 0.1
        %v1918 = vmul.f32 %v1852, 0.1
        %v1919 = vsel %vm1855, %v1697, %v1887
        %v1920 = vsel %vm1856, %v1702, %v1888
        %v1921 = vsel %vm1857, %v1707, %v1889
        %v1922 = vsel %vm1858, %v1712, %v1890
        %v1923 = vsel %vm1859, %v1717, %v1891
        %v1924 = vsel %vm1860, %v1722, %v1892
        %v1925 = vsel %vm1861, %v1727, %v1893
        %v1926 = vsel %vm1862, %v1732, %v1894
        %v1927 = vsel %vm1863, %v1737, %v1895
        %v1928 = vsel %vm1864, %v1742, %v1896
        %v1929 = vsel %vm1865, %v1747, %v1897
        %v1930 = vsel %vm1866, %v1752, %v1898
        %v1931 = vsel %vm1867, %v1757, %v1899
        %v1932 = vsel %vm1868, %v1762, %v1900
        %v1933 = vsel %vm1869, %v1767, %v1901
        %v1934 = vsel %vm1870, %v1772, %v1902
        %v1935 = vsel %vm1871, %v1777, %v1903
        %v1936 = vsel %vm1872, %v1782, %v1904
        %v1937 = vsel %vm1873, %v1787, %v1905
        %v1938 = vsel %vm1874, %v1792, %v1906
        %v1939 = vsel %vm1875, %v1797, %v1907
        %v1940 = vsel %vm1876, %v1802, %v1908
        %v1941 = vsel %vm1877, %v1807, %v1909
        %v1942 = vsel %vm1878, %v1812, %v1910
        %v1943 = vsel %vm1879, %v1817, %v1911
        %v1944 = vsel %vm1880, %v1822, %v1912
        %v1945 = vsel %vm1881, %v1827, %v1913
        %v1946 = vsel %vm1882, %v1832, %v1914
        %v1947 = vsel %vm1883, %v1837, %v1915
        %v1948 = vsel %vm1884, %v1842, %v1916
        %v1949 = vsel %vm1885, %v1847, %v1917
        %v1950 = vsel %vm1886, %v1852, %v1918
        %1951 = vst [vmem:[%s163] sm:$0xff] %v1919
        %1952 = vst [vmem:[%s163 + $0x8] sm:$0xff] %v1920
        %1953 = vst [vmem:[%s163 + $0x10] sm:$0xff] %v1921
        %1954 = vst [vmem:[%s163 + $0x18] sm:$0xff] %v1922
        %1955 = vst [vmem:[%s163 + $0x20] sm:$0xff] %v1923
        %1956 = vst [vmem:[%s163 + $0x28] sm:$0xff] %v1924
        %1957 = vst [vmem:[%s163 + $0x30] sm:$0xff] %v1925
        %1958 = vst [vmem:[%s163 + $0x38] sm:$0xff] %v1926
        %1959 = vst [vmem:[%s163 + $0x40] sm:$0xff] %v1927
        %1960 = vst [vmem:[%s163 + $0x48] sm:$0xff] %v1928
        %1961 = vst [vmem:[%s163 + $0x50] sm:$0xff] %v1929
        %1962 = vst [vmem:[%s163 + $0x58] sm:$0xff] %v1930
        %1963 = vst [vmem:[%s163 + $0x60] sm:$0xff] %v1931
        %1964 = vst [vmem:[%s163 + $0x68] sm:$0xff] %v1932
        %1965 = vst [vmem:[%s163 + $0x70] sm:$0xff] %v1933
        %1966 = vst [vmem:[%s163 + $0x78] sm:$0xff] %v1934
        %1967 = vst [vmem:[%s163 + $0x80] sm:$0xff] %v1935
        %1968 = vst [vmem:[%s163 + $0x88] sm:$0xff] %v1936
        %1969 = vst [vmem:[%s163 + $0x90] sm:$0xff] %v1937
        %1970 = vst [vmem:[%s163 + $0x98] sm:$0xff] %v1938
        %1971 = vst [vmem:[%s163 + $0xa0] sm:$0xff] %v1939
        %1972 = vst [vmem:[%s163 + $0xa8] sm:$0xff] %v1940
        %1973 = vst [vmem:[%s163 + $0xb0] sm:$0xff] %v1941
        %1974 = vst [vmem:[%s163 + $0xb8] sm:$0xff] %v1942
        %1975 = vst [vmem:[%s163 + $0xc0] sm:$0xff] %v1943
        %1976 = vst [vmem:[%s163 + $0xc8] sm:$0xff] %v1944
        %1977 = vst [vmem:[%s163 + $0xd0] sm:$0xff] %v1945
        %1978 = vst [vmem:[%s163 + $0xd8] sm:$0xff] %v1946
        %1979 = vst [vmem:[%s163 + $0xe0] sm:$0xff] %v1947
        %1980 = vst [vmem:[%s163 + $0xe8] sm:$0xff] %v1948
        %1981 = vst [vmem:[%s163 + $0xf0] sm:$0xff] %v1949
        %1982 = vst [vmem:[%s163 + $0xf8] sm:$0xff] %v1950
        %s1983 = sand.u32 %s93, 1
        %s1984 = scalar_lea.sflag [#allocation3], %s1983
        %s1985 = sand.u32 %s93, 1
        %s1986 = smul.addr %s1985, 256
        %s1987 = scalar_lea.vmem [#allocation2], %s1986
        // Predicated region
        $region33: #{tpu_custom_call.1} parent=31 // pred_check
          %p1988 = pneg %p103
        $region34: #{tpu_custom_call.1} parent=31 // pred_check_branch
          %1990 = sbr.rel (%p1988) target = $region36
        $region35: #{tpu_custom_call.1} parent=31 // pred_region
          %s1991 = smul.u32 32, %s17
          %s1993 = ssub.s32 4096, 4096
          %1994 = vsyncadd %s1984, %s1993
          %s1995 = smul.addr %s1991, 128
          %s1996 = scalar_lea.hbm %s3, %s1995
          %s1997 = sshll.u32 %s1987, 4
          %s1998 = int_to_ptr.vmem [resolvable:$true] %s1997
          %2003 = dma.vmem_to_hbm [thread:$0]  %s1998, 4096, %s1996, %s1984, 128, 128, 8
        $region36: #{tpu_custom_call.1} parent=31 // pred_fallthru
          _
      $region32: #{tpu_custom_call.1} parent=5 // pred_fallthru
        _
      %p2004 = scmp.le.s32.totalorder 2, %s12
      // Predicated region
      $region37: #{tpu_custom_call.1} parent=5 // pred_check
        %p2005 = pneg %p2004
      $region38: #{tpu_custom_call.1} parent=5 // pred_check_branch
        %2007 = sbr.rel (%p2005) target = $region40
      $region39: #{tpu_custom_call.1} parent=5 // pred_region
        %s2008 = ssub.s32 %s12, 2
        // Predicated region
        $region41: #{tpu_custom_call.1} parent=39 // pred_check
          %p2009 = pneg %p109
        $region42: #{tpu_custom_call.1} parent=39 // pred_check_branch
          %2011 = sbr.rel (%p2009) target = $region44
        $region43: #{tpu_custom_call.1} parent=39 // pred_region
          %s2012 = sand.u32 %s94, 1
          %s2013 = scalar_lea.sflag [#allocation3], %s2012
          %s2014 = sand.u32 %s94, 1
          %s2015 = smul.addr %s2014, 256
          %s2016 = scalar_lea.vmem [#allocation2], %s2015
          %2017 = dma.done %s2013, 4096
        $region44: #{tpu_custom_call.1} parent=39 // pred_fallthru
          _
      $region40: #{tpu_custom_call.1} parent=5 // pred_fallthru
        _
    $region6: #{tpu_custom_call.1} parent=1 // loop_footer
      %s16 = sadd.s32 1, %s12
    $region7: #{tpu_custom_call.1} parent=1 // loop_footer_branch
      %11 = sbr.rel target = $region3
    $region8: #{tpu_custom_call.1} parent=1 // loop_exit
      _
    %2018 = vsyncpa [#allocation3], 1
    %s2019 = scalar_lea.sflag [#allocation3], 1
    %2020 = vsyncpa %s2019, 1

</llo_original>
